<compile_context>
chip_gen: v5e
topology: v5e:2x2
jax: 0.10.0
libtpu: 0.0.40
codegen_flags: <defaults>
</compile_context>

<pallas_src>
import math

import jax
import jax.numpy as jnp
from jax.experimental import pallas as pl
from jax.experimental.pallas import tpu as pltpu


# --------------------------------------------------------------------------- #
# Config helpers
# --------------------------------------------------------------------------- #
def _round_up(n, m):
    return ((n + m - 1) // m) * m


def _vmem_capacity_bytes():
    """Physical VMEM per TensorCore, with safe fallbacks."""
    try:
        info = pltpu.get_tpu_info()
        cap = getattr(info, "vmem_capacity_bytes", None)
        if cap:
            return int(cap)
    except Exception:
        pass
    try:
        kind = jax.devices()[0].device_kind.lower()
    except Exception:
        kind = ""
    if "v7" in kind:
        return 64 * 1024 * 1024            # v7x: 64 MiB per TC
    if any(t in kind for t in ("v5", "v6", "trillium")):
        return 128 * 1024 * 1024           # v5e / v6e
    return 64 * 1024 * 1024                # conservative default


def _estimate_vmem(tm, th, dim, xb, wb):
    """Rough double-buffered working-set estimate for one grid step."""
    return (2 * tm * dim * xb              # x tiles (double buffered)
            + 2 * dim * (2 * th) * wb      # fused [gate|up] weight slab
            + 2 * th * dim * wb            # w2 slab
            + 2 * tm * dim * xb            # output tiles
            + tm * dim * 4                 # f32 accumulator scratch
            + tm * (2 * th) * 4            # h1/h3 f32 intermediate
            + tm * th * wb                 # gated activation (weight dtype)
            + tm * dim * 4)                # w2 partial product


def _choose_tiles(M, dim, hidden, xb, wb, tm_req, th_req):
    vmem_cap = _vmem_capacity_bytes()
    big_vmem = vmem_cap >= 96 * 1024 * 1024
    budget = int(vmem_cap * 0.85)          # headroom for compiler scratch

    # Row tile targets the weight-streaming -> MXU-bound crossover
    # (~640-768 rows on v6e, ~384-512 on v7x / v5e for bf16 weights).
    tm = tm_req if tm_req is not None else (768 if big_vmem else 512)
    th = th_req if th_req is not None else (1024 if big_vmem else 512)

    row_align = 8 if xb >= 4 else (16 if xb == 2 else 32)
    tm = max(row_align, min(tm, _round_up(M, row_align)))
    th = max(128, min(th, _round_up(hidden, 128)))

    # Shrink hidden tile first, then row tile, until the working set fits.
    while _estimate_vmem(tm, th, dim, xb, wb) > budget and th > 256:
        th = max(256, _round_up(th // 2, 128))
    while _estimate_vmem(tm, th, dim, xb, wb) > budget and tm > 2 * row_align:
        tm = max(row_align, _round_up(tm // 2, row_align))

    return tm, th, budget


# --------------------------------------------------------------------------- #
# Kernel
# --------------------------------------------------------------------------- #
def _ffn_kernel(x_ref, w13_ref, w2_ref, o_ref, acc_ref):
    # x_ref:   (tm, dim)      input row tile (native dtype)
    # w13_ref: (dim, 2*th)    fused [gate | up] weight slab, (K, N) orientation
    # w2_ref:  (th, dim)      down-projection slab, (K, N) orientation
    # o_ref:   (tm, dim)      output row tile (written on last hidden step)
    # acc_ref: (tm, dim)      f32 accumulator, persists across hidden steps
    j = pl.program_id(1)
    last = pl.num_programs(1) - 1

    @pl.when(j == 0)
    def _init():
        acc_ref[...] = jnp.zeros_like(acc_ref)

    x = x_ref[...]                                    # (tm, dim)
    w13 = w13_ref[...]                                # (dim, 2*th)
    th = w13.shape[1] // 2

    # One MXU pass produces both the gate and up projections for this slab.
    h13 = jnp.dot(x, w13, preferred_element_type=jnp.float32)   # (tm, 2*th)
    h1 = h13[:, :th]
    h3 = h13[:, th:]

    # SiLU + gating in f32 on the VPU/EUP; cast back for the bf16 MXU path.
    gate = h1 * jax.nn.sigmoid(h1)
    fused = (gate * h3).astype(w2_ref.dtype)          # (tm, th)

    # Partial down-projection for this hidden slab.
    partial = jnp.dot(fused, w2_ref[...], preferred_element_type=jnp.float32)

    @pl.when(j != last)
    def _accumulate():
        acc_ref[...] += partial

    @pl.when(j == last)
    def _finalize():
        # Fold the last partial directly into the output write (skips one
        # read-modify-write of the f32 accumulator).
        o_ref[...] = (acc_ref[...] + partial).astype(o_ref.dtype)


# --------------------------------------------------------------------------- #
# Weight preparation (do once at parameter-load time)
# --------------------------------------------------------------------------- #
def prepare_ffn_weights(w1, w2, w3, th):
    """Transpose nn.Linear weights to (K, N) MXU orientation, zero-pad the hidden
    axis to a multiple of `th`, and interleave w1/w3 so hidden tile j is a single
    contiguous [gate_j | up_j] slab of width 2*th."""
    hidden, dim = w1.shape
    hidden_pad = _round_up(hidden, th)
    n_h = hidden_pad // th
    pad_h = hidden_pad - hidden

    w1t = jnp.pad(w1.T, ((0, 0), (0, pad_h)))          # (dim, hidden_pad)
    w3t = jnp.pad(w3.T, ((0, 0), (0, pad_h)))          # (dim, hidden_pad)
    w13 = jnp.stack(
        [w1t.reshape(dim, n_h, th), w3t.reshape(dim, n_h, th)], axis=2
    ).reshape(dim, n_h * 2 * th)                        # (dim, 2*hidden_pad)

    w2t = jnp.pad(w2.T, ((0, pad_h), (0, 0)))           # (hidden_pad, dim)
    return w13, w2t, n_h


# --------------------------------------------------------------------------- #
# Wrapper
# --------------------------------------------------------------------------- #
def feed_forward_pallas(x, w1, w2, w3, *, tm=None, th=None):
    """x: (batch, seq, dim); w1, w3: (hidden, dim); w2: (dim, hidden)."""
    batch, seq, dim = x.shape
    hidden = w1.shape[0]
    M = batch * seq

    xb = jnp.dtype(x.dtype).itemsize
    wb = jnp.dtype(w1.dtype).itemsize
    tm, th, budget = _choose_tiles(M, dim, hidden, xb, wb, tm, th)

    w13, w2t, n_h = prepare_ffn_weights(w1, w2, w3, th)

    m_tiles = pl.cdiv(M, tm)
    M_pad = m_tiles * tm
    x2d = x.reshape(M, dim)
    if M_pad != M:
        x2d = jnp.pad(x2d, ((0, M_pad - M), (0, 0)))

    # TODO(synk): for decode-sized M (m_tiles < 2) on v7x, split the hidden axis
    # across the 2 TensorCores (two partial accumulators + final add) so the
    # second core does not idle.
    out2d = pl.pallas_call(
        _ffn_kernel,
        out_shape=jax.ShapeDtypeStruct((M_pad, dim), x.dtype),
        grid_spec=pltpu.PrefetchScalarGridSpec(
            num_scalar_prefetch=0,
            grid=(m_tiles, n_h),
            in_specs=[
                pl.BlockSpec((tm, dim), lambda i, j: (i, 0)),       # x rows
                pl.BlockSpec((dim, 2 * th), lambda i, j: (0, j)),   # [gate|up] slab
                pl.BlockSpec((th, dim), lambda i, j: (j, 0)),       # w2 slab
            ],
            out_specs=pl.BlockSpec((tm, dim), lambda i, j: (i, 0)),
            scratch_shapes=[pltpu.VMEM((tm, dim), jnp.float32)],
        ),
        compiler_params=pltpu.CompilerParams(
            dimension_semantics=("parallel", "arbitrary"),
            vmem_limit_bytes=budget,
        ),
    )(x2d, w13, w2t)

    return out2d[:M].reshape(batch, seq, dim)


# --------------------------------------------------------------------------- #
# Reference + test
# --------------------------------------------------------------------------- #
def _ffn_reference(x, w1, w2, w3):
    """Pure-JAX reference matching PyTorch FeedForward.forward."""
    h1 = x @ w1.T
    swish = h1 * jax.nn.sigmoid(h1)
    return (swish * (x @ w3.T)) @ w2.T


if __name__ == "__main__":
    # Small, shape-consistent config (mirrors ModelArgs hidden_dim logic).
    dim = 256
    multiple_of = 256
    hidden_dim = int(2 * 4 * dim / 3)                                           # 682
    hidden_dim = multiple_of * ((hidden_dim + multiple_of - 1) // multiple_of)  # 768

    key = jax.random.PRNGKey(0)
    kx, k1, k2, k3 = jax.random.split(key, 4)

    # nn.Linear weight shapes: (out_features, in_features)
    w1 = jax.random.normal(k1, (hidden_dim, dim), dtype=jnp.float32) / math.sqrt(dim)
    w2 = jax.random.normal(k2, (dim, hidden_dim), dtype=jnp.float32) / math.sqrt(hidden_dim)
    w3 = jax.random.normal(k3, (hidden_dim, dim), dtype=jnp.float32) / math.sqrt(dim)

    # Case 1: default chip-aware tiles (single hidden step at this size,
    # exercises the row-padding path: M = 16).
    batch, seq = 2, 8
    x = jax.random.normal(kx, (batch, seq, dim), dtype=jnp.float32)
    ref = _ffn_reference(x, w1, w2, w3)
    out = jax.block_until_ready(feed_forward_pallas(x, w1, w2, w3))
    assert out.shape == (batch, seq, dim)
    assert jnp.allclose(out, ref, atol=2e-4, rtol=2e-4), "mismatch vs reference (case 1)"

    # Case 2: forced multi-tile grid — multiple row tiles, row padding, and a
    # multi-step hidden reduction (n_h = 3) to exercise init/accumulate/finalize.
    b2, s2 = 3, 40                      # M = 120
    x2 = jax.random.normal(kx, (b2, s2, dim), dtype=jnp.float32)
    ref2 = _ffn_reference(x2, w1, w2, w3)
    out2 = jax.block_until_ready(feed_forward_pallas(x2, w1, w2, w3, tm=64, th=256))
    assert out2.shape == (b2, s2, dim)
    assert jnp.allclose(out2, ref2, atol=2e-4, rtol=2e-4), "mismatch vs reference (case 2)"

    print("KERNEL_OK")
</pallas_src>

<mosaic_0001>
module attributes {stable_mosaic.version = 11 : i64} {
  func.func @_ffn_kernel(%arg0: i32, %arg1: i32, %arg2: memref<16x256xf32, #tpu.memory_space<vmem>>, %arg3: memref<256x1024xf32, #tpu.memory_space<vmem>>, %arg4: memref<512x256xf32, #tpu.memory_space<vmem>>, %arg5: memref<16x256xf32, #tpu.memory_space<vmem>>, %arg6: memref<16x256xf32, #tpu.memory_space<vmem>>) attributes {dimension_semantics = [#tpu.dimension_semantics<parallel>, #tpu.dimension_semantics<arbitrary>], iteration_bounds = array<i64: 1, 2>, scalar_prefetch = 0 : i64, scratch_operands = 1 : i64, tpu.core_type = #tpu.core_type<tc>, window_params = [{transform_indices = @transform_0, window_bounds = array<i64: 16, 256>}, {transform_indices = @transform_1, window_bounds = array<i64: 256, 1024>}, {transform_indices = @transform_2, window_bounds = array<i64: 512, 256>}, {transform_indices = @transform_3, window_bounds = array<i64: 16, 256>}]} {
    %c0_i32 = arith.constant 0 : i32
    %0 = arith.cmpi eq, %arg1, %c0_i32 : i32
    %1 = arith.extui %0 : i1 to i32
    %c0_i32_0 = arith.constant 0 : i32
    %2 = arith.cmpi ne, %1, %c0_i32_0 : i32
    scf.if %2 {
      %cst_11 = arith.constant 0.000000e+00 : f32
      %23 = vector.broadcast %cst_11 : f32 to vector<16x256xf32>
      %c0_12 = arith.constant 0 : index
      %c0_13 = arith.constant 0 : index
      %24 = vector.load %arg6[%c0_12, %c0_13] : memref<16x256xf32, #tpu.memory_space<vmem>>, vector<16x256xf32>
      tpu.vector_store %arg6[%c0_12, %c0_13], %23 {strides = array<i32>} : memref<16x256xf32, #tpu.memory_space<vmem>>, vector<16x256xf32>,
    } else {
    }
    %c0 = arith.constant 0 : index
    %c0_1 = arith.constant 0 : index
    %3 = vector.load %arg2[%c0, %c0_1] : memref<16x256xf32, #tpu.memory_space<vmem>>, vector<16x256xf32>
    %c0_2 = arith.constant 0 : index
    %c0_3 = arith.constant 0 : index
    %4 = vector.load %arg3[%c0_2, %c0_3] : memref<256x1024xf32, #tpu.memory_space<vmem>>, vector<256x1024xf32>
    %cst = arith.constant dense<0.000000e+00> : vector<16x1024xf32>
    %5 = tpu.matmul %3, %4, %cst {dimension_numbers = #tpu.dot_dimension_numbers<[1], [0], [0], [1], [0, 0, 1, 1], [], []>} : vector<16x256xf32>, vector<256x1024xf32>, vector<16x1024xf32> -> vector<16x1024xf32>
    %6 = vector.extract_strided_slice %5 {offsets = [0, 0], sizes = [16, 512], strides = [1, 1]} : vector<16x1024xf32> to vector<16x512xf32>
    %7 = vector.extract_strided_slice %5 {offsets = [0, 512], sizes = [16, 512], strides = [1, 1]} : vector<16x1024xf32> to vector<16x512xf32>
    %8 = arith.negf %6 : vector<16x512xf32>
    %9 = math.exp %8 : vector<16x512xf32>
    %cst_4 = arith.constant 1.000000e+00 : f32
    %10 = vector.broadcast %cst_4 : f32 to vector<16x512xf32>
    %11 = arith.addf %10, %9 : vector<16x512xf32>
    %12 = arith.divf %10, %11 : vector<16x512xf32>
    %13 = arith.mulf %6, %12 : vector<16x512xf32>
    %14 = arith.mulf %13, %7 : vector<16x512xf32>
    %c0_5 = arith.constant 0 : index
    %c0_6 = arith.constant 0 : index
    %15 = vector.load %arg4[%c0_5, %c0_6] : memref<512x256xf32, #tpu.memory_space<vmem>>, vector<512x256xf32>
    %cst_7 = arith.constant dense<0.000000e+00> : vector<16x256xf32>
    %16 = tpu.matmul %14, %15, %cst_7 {dimension_numbers = #tpu.dot_dimension_numbers<[1], [0], [0], [1], [0, 0, 1, 1], [], []>} : vector<16x512xf32>, vector<512x256xf32>, vector<16x256xf32> -> vector<16x256xf32>
    %c1_i32 = arith.constant 1 : i32
    %17 = arith.cmpi ne, %arg1, %c1_i32 : i32
    %18 = arith.extui %17 : i1 to i32
    %c0_i32_8 = arith.constant 0 : i32
    %19 = arith.cmpi ne, %18, %c0_i32_8 : i32
    scf.if %19 {
      %c0_11 = arith.constant 0 : index
      %c0_12 = arith.constant 0 : index
      %23 = vector.load %arg6[%c0_11, %c0_12] : memref<16x256xf32, #tpu.memory_space<vmem>>, vector<16x256xf32>
      %24 = arith.addf %23, %16 : vector<16x256xf32>
      %c0_13 = arith.constant 0 : index
      %c0_14 = arith.constant 0 : index
      %25 = vector.load %arg6[%c0_13, %c0_14] : memref<16x256xf32, #tpu.memory_space<vmem>>, vector<16x256xf32>
      tpu.vector_store %arg6[%c0_13, %c0_14], %24 {strides = array<i32>} : memref<16x256xf32, #tpu.memory_space<vmem>>, vector<16x256xf32>,
    } else {
    }
    %c1_i32_9 = arith.constant 1 : i32
    %20 = arith.cmpi eq, %arg1, %c1_i32_9 : i32
    %21 = arith.extui %20 : i1 to i32
    %c0_i32_10 = arith.constant 0 : i32
    %22 = arith.cmpi ne, %21, %c0_i32_10 : i32
    scf.if %22 {
      %c0_11 = arith.constant 0 : index
      %c0_12 = arith.constant 0 : index
      %23 = vector.load %arg6[%c0_11, %c0_12] : memref<16x256xf32, #tpu.memory_space<vmem>>, vector<16x256xf32>
      %24 = arith.addf %23, %16 : vector<16x256xf32>
      %c0_13 = arith.constant 0 : index
      %c0_14 = arith.constant 0 : index
      %25 = vector.load %arg5[%c0_13, %c0_14] : memref<16x256xf32, #tpu.memory_space<vmem>>, vector<16x256xf32>
      tpu.vector_store %arg5[%c0_13, %c0_14], %24 {strides = array<i32>} : memref<16x256xf32, #tpu.memory_space<vmem>>, vector<16x256xf32>,
    } else {
    }
    return
  }
  func.func @transform_0(%arg0: i32, %arg1: i32) -> (i32, i32) {
    %c0_i32 = arith.constant 0 : i32
    %c0_i32_0 = arith.constant 0 : i32
    return %arg0, %c0_i32 : i32, i32
  }
  func.func @transform_1(%arg0: i32, %arg1: i32) -> (i32, i32) {
    %c0_i32 = arith.constant 0 : i32
    %c0_i32_0 = arith.constant 0 : i32
    return %c0_i32, %arg1 : i32, i32
  }
  func.func @transform_2(%arg0: i32, %arg1: i32) -> (i32, i32) {
    %c0_i32 = arith.constant 0 : i32
    %c0_i32_0 = arith.constant 0 : i32
    return %arg1, %c0_i32 : i32, i32
  }
  func.func @transform_3(%arg0: i32, %arg1: i32) -> (i32, i32) {
    %c0_i32 = arith.constant 0 : i32
    %c0_i32_0 = arith.constant 0 : i32
    return %arg0, %c0_i32 : i32, i32
  }
}

</mosaic_0001>

<llo_original>
// kernel: tpu_custom_call.1
$region0: #{tpu_custom_call.1}
  #allocation0 [shape = 'u32[]', space=smem, size = 0x4, offset = 0x4, fixed_abs, tag = 'smem constant byte address 0x4 - core index']
  #allocation1 [shape = 'u32[72,128]{1,0:T(1,128)}', space=vmem, size = 0x9000, scoped, tag = 'internal scratch']
  #allocation2 [shape = 'f32[16,256]{1,0:T(8,128)}', space=vmem, size = 0x4000, scoped, tag = 'scratch operand']
  %s0 = inlined_call_operand.hbm [shape: f32[16,256], index: 0, kind: input, shape index: {}]
  %s1 = inlined_call_operand.hbm [shape: f32[256,2048], index: 1, kind: input, shape index: {}]
  %s2 = inlined_call_operand.hbm [shape: f32[1024,256], index: 2, kind: input, shape index: {}]
  %s3 = inlined_call_operand.hbm [shape: f32[16,256], index: 3, kind: output, shape index: {}]
  %s4 = sld [smem:[#allocation0]]
  $region69: #{tpu_custom_call.1} parent=0
    _
  %s6 = ssub.s32 1, %s4
  %s7 = scalar_select 0, %s6, %s4
  $region1: #{tpu_custom_call.1} parent=0
    #allocation3 [shape = 'u8[16384]{0}', space=vmem, size = 0x4000, scoped, tag = 'input window, operand 0, single buffered']
    #allocation4 [shape = 's32[2]{0}', space=sflag, size = 0x8, scoped, tag = 'scoped memory for tpu_custom_call.1']
    #allocation5 [shape = 's32[2]{0}', space=sflag, size = 0x8, scoped, tag = 'scoped memory for tpu_custom_call.1']
    #allocation6 [shape = 'u8[2097152]{0}', space=vmem, size = 0x200000, scoped, tag = 'input window, operand 1']
    #allocation7 [shape = 's32[2]{0}', space=sflag, size = 0x8, scoped, tag = 'scoped memory for tpu_custom_call.1']
    #allocation8 [shape = 'u8[1048576]{0}', space=vmem, size = 0x100000, scoped, tag = 'input window, operand 2']
    #allocation9 [shape = 'u8[16384]{0}', space=vmem, size = 0x4000, scoped, tag = 'output window, operand 0, single buffered']
    %8 = vsyncpa [#allocation4], 0
    %9 = vsyncpa [#allocation7], 0
    %s10 = scalar_lea.sflag [#allocation7], 1
    %11 = vsyncpa %s10, 0
    %12 = vsyncpa [#allocation5], 0
    loop: start=0, step=1, limit=4
    $region2: #{tpu_custom_call.1} parent=1 // loop_pre_header
      _
    $region3: #{tpu_custom_call.1} parent=1 // loop_header
      %s14 = sphi 0, %s18
      %p15 = scmp.ge.s32.totalorder %s14, 4
      %s21 = sphi 0, %s33
      %s22 = sphi 0, %s29
      %s23 = sphi 0, %s21
      %s24 = sphi 0, %s22
      %s25 = sphi 0, %s23
      %s26 = sphi 0, %s24
      %s36 = sphi 0, %s38
      %s39 = sphi 0, %s36
      %s40 = sphi 0, %s39
      %s56 = sphi 0, %s40
      %s62 = sphi 0, %s64
      %s65 = sphi 0, %s62
      %s66 = sphi 0, %s65
      %s82 = sphi 0, %s66
      %s88 = sphi 0, %s90
      %s91 = sphi 0, %s88
      %s92 = sphi 0, %s91
      %s108 = sphi 0, %s92
      %s114 = sphi 0, %s116
      %s117 = sphi 0, %s114
      %s118 = sphi 0, %s117
      %s134 = sphi 0, %s118
    $region4: #{tpu_custom_call.1} parent=1 // loop_header_branch
      %17 = sbr.rel (%p15) target = $region8
    $region5: #{tpu_custom_call.1} parent=1 // loop_body
      %s19 = ssub.s32 %s14, 1
      %s20 = ssub.s32 %s14, 2
      %s27 = sadd.s32 1, %s22
      %p28 = scmp.ge.s32.totalorder %s27, 2
      %s29 = scalar_select %p28, 0, %s27
      %s30 = sadd.s32 1, %s21
      %s31 = scalar_select %p28, %s30, %s21
      %p32 = scmp.ge.s32.totalorder %s31, 1
      %s33 = scalar_select %p32, 0, %s31
      %s34 = ssub.s32 %s21, %s33
      %p35 = scmp.eq.s32.totalorder %s34, 0
      %s37 = sadd.s32 %s36, 1
      %s38 = scalar_select %p35, %s36, %s37
      %p41 = pneg %p35
      %p42 = scmp.eq.s32.totalorder %s14, 1
      %p43 = por %p41, %p42
      %p44 = scmp.ne.s32.totalorder %s36, %s39
      %p45 = scmp.eq.s32.totalorder %s14, 0
      %p46 = por %p44, %p45
      %p47 = scmp.ne.s32.totalorder %s36, %s39
      %p48 = scmp.eq.s32.totalorder %s19, 1
      %p49 = por %p47, %p48
      %p50 = scmp.ne.s32.totalorder %s39, %s40
      %p51 = scmp.eq.s32.totalorder %s19, 0
      %p52 = por %p50, %p51
      %p53 = scmp.ne.s32.totalorder %s39, %s40
      %p54 = scmp.eq.s32.totalorder %s20, 1
      %p55 = por %p53, %p54
      %p57 = scmp.ne.s32.totalorder %s40, %s56
      %p58 = scmp.eq.s32.totalorder %s20, 0
      %p59 = por %p57, %p58
      %s60 = ssub.s32 %s22, %s29
      %p61 = scmp.eq.s32.totalorder %s60, 0
      %s63 = sadd.s32 %s62, 1
      %s64 = scalar_select %p61, %s62, %s63
      %p67 = pneg %p61
      %p68 = scmp.eq.s32.totalorder %s14, 1
      %p69 = por %p67, %p68
      %p70 = scmp.ne.s32.totalorder %s62, %s65
      %p71 = scmp.eq.s32.totalorder %s14, 0
      %p72 = por %p70, %p71
      %p73 = scmp.ne.s32.totalorder %s62, %s65
      %p74 = scmp.eq.s32.totalorder %s19, 1
      %p75 = por %p73, %p74
      %p76 = scmp.ne.s32.totalorder %s65, %s66
      %p77 = scmp.eq.s32.totalorder %s19, 0
      %p78 = por %p76, %p77
      %p79 = scmp.ne.s32.totalorder %s65, %s66
      %p80 = scmp.eq.s32.totalorder %s20, 1
      %p81 = por %p79, %p80
      %p83 = scmp.ne.s32.totalorder %s66, %s82
      %p84 = scmp.eq.s32.totalorder %s20, 0
      %p85 = por %p83, %p84
      %s86 = ssub.s32 %s22, %s29
      %p87 = scmp.eq.s32.totalorder %s86, 0
      %s89 = sadd.s32 %s88, 1
      %s90 = scalar_select %p87, %s88, %s89
      %p93 = pneg %p87
      %p94 = scmp.eq.s32.totalorder %s14, 1
      %p95 = por %p93, %p94
      %p96 = scmp.ne.s32.totalorder %s88, %s91
      %p97 = scmp.eq.s32.totalorder %s14, 0
      %p98 = por %p96, %p97
      %p99 = scmp.ne.s32.totalorder %s88, %s91
      %p100 = scmp.eq.s32.totalorder %s19, 1
      %p101 = por %p99, %p100
      %p102 = scmp.ne.s32.totalorder %s91, %s92
      %p103 = scmp.eq.s32.totalorder %s19, 0
      %p104 = por %p102, %p103
      %p105 = scmp.ne.s32.totalorder %s91, %s92
      %p106 = scmp.eq.s32.totalorder %s20, 1
      %p107 = por %p105, %p106
      %p109 = scmp.ne.s32.totalorder %s92, %s108
      %p110 = scmp.eq.s32.totalorder %s20, 0
      %p111 = por %p109, %p110
      %s112 = ssub.s32 %s21, %s33
      %p113 = scmp.eq.s32.totalorder %s112, 0
      %s115 = sadd.s32 %s114, 1
      %s116 = scalar_select %p113, %s114, %s115
      %p119 = pneg %p113
      %p120 = scmp.eq.s32.totalorder %s14, 1
      %p121 = por %p119, %p120
      %p122 = scmp.ne.s32.totalorder %s114, %s117
      %p123 = scmp.eq.s32.totalorder %s14, 0
      %p124 = por %p122, %p123
      %p125 = scmp.ne.s32.totalorder %s114, %s117
      %p126 = scmp.eq.s32.totalorder %s19, 1
      %p127 = por %p125, %p126
      %p128 = scmp.ne.s32.totalorder %s117, %s118
      %p129 = scmp.eq.s32.totalorder %s19, 0
      %p130 = por %p128, %p129
      %p131 = scmp.ne.s32.totalorder %s117, %s118
      %p132 = scmp.eq.s32.totalorder %s20, 1
      %p133 = por %p131, %p132
      %p135 = scmp.ne.s32.totalorder %s118, %s134
      %p136 = scmp.eq.s32.totalorder %s20, 0
      %p137 = por %p135, %p136
      %p138 = scmp.le.s32.totalorder 1, %s14
      %p139 = scmp.lt.s32.totalorder %s14, 3
      %p140 = pnand %p138, %p139
      %p141 = pneg %p140
      // Predicated region
      $region9: #{tpu_custom_call.1} parent=5 // pred_check
        _
      $region10: #{tpu_custom_call.1} parent=5 // pred_check_branch
        %143 = sbr.rel (%p140) target = $region12
      $region11: #{tpu_custom_call.1} parent=5 // pred_region
        %s144 = ssub.s32 %s14, 1
        // Predicated region
        $region13: #{tpu_custom_call.1} parent=11 // pred_check
          %p145 = pneg %p52
        $region14: #{tpu_custom_call.1} parent=11 // pred_check_branch
          %147 = sbr.rel (%p145) target = $region16
        $region15: #{tpu_custom_call.1} parent=11 // pred_region
          %s148 = smul.u32 2, %s23
          %150 = vsyncadd [#allocation4], 0
          %s151 = smul.addr %s148, 2
          %s152 = smul.addr %s151, 8
          %s153 = scalar_lea.hbm %s0, %s152
          %s154 = sshll.u32 %s153, 4
          %s155 = int_to_ptr.hbm [resolvable:$true] %s154
          %s156 = sshll.u32 [#allocation3], 4
          %s157 = int_to_ptr.vmem [resolvable:$true] %s156
          %162 = dma.hbm_to_vmem [thread:$0]  %s155, 512, %s157, [#allocation4], 256, 256, 16
        $region16: #{tpu_custom_call.1} parent=11 // pred_fallthru
          _
      $region12: #{tpu_custom_call.1} parent=5 // pred_fallthru
        _
      %p163 = scmp.lt.s32.totalorder %s14, 2
      // Predicated region
      $region17: #{tpu_custom_call.1} parent=5 // pred_check
        %p164 = pneg %p163
      $region18: #{tpu_custom_call.1} parent=5 // pred_check_branch
        %166 = sbr.rel (%p164) target = $region20
      $region19: #{tpu_custom_call.1} parent=5 // pred_region
        // Predicated region
        $region21: #{tpu_custom_call.1} parent=19 // pred_check
          %p167 = pneg %p72
        $region22: #{tpu_custom_call.1} parent=19 // pred_check_branch
          %169 = sbr.rel (%p167) target = $region24
        $region23: #{tpu_custom_call.1} parent=19 // pred_region
          %s170 = sand.u32 %s14, 1
          %s171 = scalar_lea.sflag [#allocation7], %s170
          %s172 = sand.u32 %s62, 1
          %s173 = smul.addr %s172, 2048
          %s174 = scalar_lea.vmem [#allocation6], %s173
          %s175 = smul.u32 8, %s22
          %177 = vsyncadd %s171, 0
          %s178 = smul.addr %s175, 8
          %s179 = scalar_lea.hbm %s1, %s178
          %s180 = sshll.u32 %s179, 4
          %s181 = int_to_ptr.hbm [resolvable:$true] %s180
          %s182 = sshll.u32 %s174, 4
          %s183 = int_to_ptr.vmem [resolvable:$true] %s182
          %188 = dma.hbm_to_vmem [thread:$0]  %s181, 32768, %s183, %s171, 2048, 1024, 64
        $region24: #{tpu_custom_call.1} parent=19 // pred_fallthru
          _
        // Predicated region
        $region25: #{tpu_custom_call.1} parent=19 // pred_check
          %p189 = pneg %p98
        $region26: #{tpu_custom_call.1} parent=19 // pred_check_branch
          %191 = sbr.rel (%p189) target = $region28
        $region27: #{tpu_custom_call.1} parent=19 // pred_region
          %s192 = sand.u32 %s14, 1
          %s193 = scalar_lea.sflag [#allocation7], %s192
          %s194 = sand.u32 %s88, 1
          %s195 = smul.addr %s194, 1024
          %s196 = scalar_lea.vmem [#allocation8], %s195
          %s197 = smul.u32 64, %s22
          %199 = vsyncadd %s193, 0
          %s200 = smul.addr %s197, 2
          %s201 = smul.addr %s200, 8
          %s202 = scalar_lea.hbm %s2, %s201
          %s203 = sshll.u32 %s202, 4
          %s204 = int_to_ptr.hbm [resolvable:$true] %s203
          %s205 = sshll.u32 %s196, 4
          %s206 = int_to_ptr.vmem [resolvable:$true] %s205
          %211 = dma.hbm_to_vmem [thread:$0]  %s204, 16384, %s206, %s193, 256, 256, 16
        $region28: #{tpu_custom_call.1} parent=19 // pred_fallthru
          _
      $region20: #{tpu_custom_call.1} parent=5 // pred_fallthru
        _
      %p212 = scmp.le.s32.totalorder 1, %s14
      %p213 = scmp.lt.s32.totalorder %s14, 3
      %p214 = pnand %p212, %p213
      %p215 = pneg %p214
      // Predicated region
      $region29: #{tpu_custom_call.1} parent=5 // pred_check
        _
      $region30: #{tpu_custom_call.1} parent=5 // pred_check_branch
        %217 = sbr.rel (%p214) target = $region32
      $region31: #{tpu_custom_call.1} parent=5 // pred_region
        %s218 = ssub.s32 %s14, 1
        // Predicated region
        $region33: #{tpu_custom_call.1} parent=31 // pred_check
          %p219 = pneg %p52
        $region34: #{tpu_custom_call.1} parent=31 // pred_check_branch
          %221 = sbr.rel (%p219) target = $region36
        $region35: #{tpu_custom_call.1} parent=31 // pred_region
          %223 = dma.done [#allocation4], 512
        $region36: #{tpu_custom_call.1} parent=31 // pred_fallthru
          _
        %s224 = sand.u32 %s19, 1
        %s225 = scalar_lea.sflag [#allocation7], %s224
        %s226 = sand.u32 %s65, 1
        %s227 = smul.addr %s226, 2048
        %s228 = scalar_lea.vmem [#allocation6], %s227
        // Predicated region
        $region37: #{tpu_custom_call.1} parent=31 // pred_check
          %p229 = pneg %p78
        $region38: #{tpu_custom_call.1} parent=31 // pred_check_branch
          %231 = sbr.rel (%p229) target = $region40
        $region39: #{tpu_custom_call.1} parent=31 // pred_region
          %233 = dma.done %s225, 32768
        $region40: #{tpu_custom_call.1} parent=31 // pred_fallthru
          _
        %s234 = sand.u32 %s19, 1
        %s235 = scalar_lea.sflag [#allocation7], %s234
        %s236 = sand.u32 %s91, 1
        %s237 = smul.addr %s236, 1024
        %s238 = scalar_lea.vmem [#allocation8], %s237
        // Predicated region
        $region41: #{tpu_custom_call.1} parent=31 // pred_check
          %p239 = pneg %p104
        $region42: #{tpu_custom_call.1} parent=31 // pred_check_branch
          %241 = sbr.rel (%p239) target = $region44
        $region43: #{tpu_custom_call.1} parent=31 // pred_region
          %243 = dma.done %s235, 16384
        $region44: #{tpu_custom_call.1} parent=31 // pred_fallthru
          _
        %p244 = pneg %p52
        %p245 = pneg %p49
        %s246 = sand.u32 %s19, 1
        %s247 = scalar_lea.sflag [#allocation7], %s246
        %s248 = sand.u32 %s65, 1
        %s249 = smul.addr %s248, 2048
        %s250 = scalar_lea.vmem [#allocation6], %s249
        %p251 = pneg %p78
        %p252 = pneg %p75
        %s253 = sand.u32 %s19, 1
        %s254 = scalar_lea.sflag [#allocation7], %s253
        %s255 = sand.u32 %s91, 1
        %s256 = smul.addr %s255, 1024
        %s257 = scalar_lea.vmem [#allocation8], %s256
        %p258 = pneg %p104
        %p259 = pneg %p101
        %p260 = pneg %p130
        %p261 = pneg %p127
        %s262 = smul.u32 2, %s23
        %s263 = smul.u32 8, %s24
        %s264 = smul.u32 64, %s24
        %s265 = smul.u32 2, %s23
        %p266 = scmp.eq.s32.totalorder %s24, 0
        // Predicated region
        $region45: #{tpu_custom_call.1} parent=31 // pred_check
          %p267 = pneg %p266
        $region46: #{tpu_custom_call.1} parent=31 // pred_check_branch
          %269 = sbr.rel (%p267) target = $region48
        $region47: #{tpu_custom_call.1} parent=31 // pred_region
          %270 = vst [vmem:[#allocation2] sm:$0xff] 0.0
          %271 = vst [vmem:[#allocation2 + $0x8] sm:$0xff] 0.0
          %272 = vst [vmem:[#allocation2 + $0x10] sm:$0xff] 0.0
          %273 = vst [vmem:[#allocation2 + $0x18] sm:$0xff] 0.0
        $region48: #{tpu_custom_call.1} parent=31 // pred_fallthru
          _
        %v274 = vld [vmem:[#allocation3] sm:$0xff]
        %v275 = vld [vmem:[#allocation3 + $0x8] sm:$0xff]
        %v276 = vld [vmem:[#allocation3 + $0x10] sm:$0xff]
        %v277 = vld [vmem:[#allocation3 + $0x18] sm:$0xff]
        %v278 = vld [vmem:[%s228] sm:$0xff]
        %v279 = vld [vmem:[%s228 + $0x8] sm:$0xff]
        %v280 = vld [vmem:[%s228 + $0x10] sm:$0xff]
        %v281 = vld [vmem:[%s228 + $0x18] sm:$0xff]
        %v282 = vld [vmem:[%s228 + $0x20] sm:$0xff]
        %v283 = vld [vmem:[%s228 + $0x28] sm:$0xff]
        %v284 = vld [vmem:[%s228 + $0x30] sm:$0xff]
        %v285 = vld [vmem:[%s228 + $0x38] sm:$0xff]
        %v286 = vld [vmem:[%s228 + $0x40] sm:$0xff]
        %v287 = vld [vmem:[%s228 + $0x48] sm:$0xff]
        %v288 = vld [vmem:[%s228 + $0x50] sm:$0xff]
        %v289 = vld [vmem:[%s228 + $0x58] sm:$0xff]
        %v290 = vld [vmem:[%s228 + $0x60] sm:$0xff]
        %v291 = vld [vmem:[%s228 + $0x68] sm:$0xff]
        %v292 = vld [vmem:[%s228 + $0x70] sm:$0xff]
        %v293 = vld [vmem:[%s228 + $0x78] sm:$0xff]
        %v294 = vld [vmem:[%s228 + $0x80] sm:$0xff]
        %v295 = vld [vmem:[%s228 + $0x88] sm:$0xff]
        %v296 = vld [vmem:[%s228 + $0x90] sm:$0xff]
        %v297 = vld [vmem:[%s228 + $0x98] sm:$0xff]
        %v298 = vld [vmem:[%s228 + $0xa0] sm:$0xff]
        %v299 = vld [vmem:[%s228 + $0xa8] sm:$0xff]
        %v300 = vld [vmem:[%s228 + $0xb0] sm:$0xff]
        %v301 = vld [vmem:[%s228 + $0xb8] sm:$0xff]
        %v302 = vld [vmem:[%s228 + $0xc0] sm:$0xff]
        %v303 = vld [vmem:[%s228 + $0xc8] sm:$0xff]
        %v304 = vld [vmem:[%s228 + $0xd0] sm:$0xff]
        %v305 = vld [vmem:[%s228 + $0xd8] sm:$0xff]
        %v306 = vld [vmem:[%s228 + $0xe0] sm:$0xff]
        %v307 = vld [vmem:[%s228 + $0xe8] sm:$0xff]
        %v308 = vld [vmem:[%s228 + $0xf0] sm:$0xff]
        %v309 = vld [vmem:[%s228 + $0xf8] sm:$0xff]
        %v310 = vld [vmem:[%s228 + $0x100] sm:$0xff]
        %v311 = vld [vmem:[%s228 + $0x108] sm:$0xff]
        %v312 = vld [vmem:[%s228 + $0x110] sm:$0xff]
        %v313 = vld [vmem:[%s228 + $0x118] sm:$0xff]
        %v314 = vld [vmem:[%s228 + $0x120] sm:$0xff]
        %v315 = vld [vmem:[%s228 + $0x128] sm:$0xff]
        %v316 = vld [vmem:[%s228 + $0x130] sm:$0xff]
        %v317 = vld [vmem:[%s228 + $0x138] sm:$0xff]
        %v318 = vld [vmem:[%s228 + $0x140] sm:$0xff]
        %v319 = vld [vmem:[%s228 + $0x148] sm:$0xff]
        %v320 = vld [vmem:[%s228 + $0x150] sm:$0xff]
        %v321 = vld [vmem:[%s228 + $0x158] sm:$0xff]
        %v322 = vld [vmem:[%s228 + $0x160] sm:$0xff]
        %v323 = vld [vmem:[%s228 + $0x168] sm:$0xff]
        %v324 = vld [vmem:[%s228 + $0x170] sm:$0xff]
        %v325 = vld [vmem:[%s228 + $0x178] sm:$0xff]
        %v326 = vld [vmem:[%s228 + $0x180] sm:$0xff]
        %v327 = vld [vmem:[%s228 + $0x188] sm:$0xff]
        %v328 = vld [vmem:[%s228 + $0x190] sm:$0xff]
        %v329 = vld [vmem:[%s228 + $0x198] sm:$0xff]
        %v330 = vld [vmem:[%s228 + $0x1a0] sm:$0xff]
        %v331 = vld [vmem:[%s228 + $0x1a8] sm:$0xff]
        %v332 = vld [vmem:[%s228 + $0x1b0] sm:$0xff]
        %v333 = vld [vmem:[%s228 + $0x1b8] sm:$0xff]
        %v334 = vld [vmem:[%s228 + $0x1c0] sm:$0xff]
        %v335 = vld [vmem:[%s228 + $0x1c8] sm:$0xff]
        %v336 = vld [vmem:[%s228 + $0x1d0] sm:$0xff]
        %v337 = vld [vmem:[%s228 + $0x1d8] sm:$0xff]
        %v338 = vld [vmem:[%s228 + $0x1e0] sm:$0xff]
        %v339 = vld [vmem:[%s228 + $0x1e8] sm:$0xff]
        %v340 = vld [vmem:[%s228 + $0x1f0] sm:$0xff]
        %v341 = vld [vmem:[%s228 + $0x1f8] sm:$0xff]
        %v342 = vld [vmem:[%s228 + $0x200] sm:$0xff]
        %v343 = vld [vmem:[%s228 + $0x208] sm:$0xff]
        %v344 = vld [vmem:[%s228 + $0x210] sm:$0xff]
        %v345 = vld [vmem:[%s228 + $0x218] sm:$0xff]
        %v346 = vld [vmem:[%s228 + $0x220] sm:$0xff]
        %v347 = vld [vmem:[%s228 + $0x228] sm:$0xff]
        %v348 = vld [vmem:[%s228 + $0x230] sm:$0xff]
        %v349 = vld [vmem:[%s228 + $0x238] sm:$0xff]
        %v350 = vld [vmem:[%s228 + $0x240] sm:$0xff]
        %v351 = vld [vmem:[%s228 + $0x248] sm:$0xff]
        %v352 = vld [vmem:[%s228 + $0x250] sm:$0xff]
        %v353 = vld [vmem:[%s228 + $0x258] sm:$0xff]
        %v354 = vld [vmem:[%s228 + $0x260] sm:$0xff]
        %v355 = vld [vmem:[%s228 + $0x268] sm:$0xff]
        %v356 = vld [vmem:[%s228 + $0x270] sm:$0xff]
        %v357 = vld [vmem:[%s228 + $0x278] sm:$0xff]
        %v358 = vld [vmem:[%s228 + $0x280] sm:$0xff]
        %v359 = vld [vmem:[%s228 + $0x288] sm:$0xff]
        %v360 = vld [vmem:[%s228 + $0x290] sm:$0xff]
        %v361 = vld [vmem:[%s228 + $0x298] sm:$0xff]
        %v362 = vld [vmem:[%s228 + $0x2a0] sm:$0xff]
        %v363 = vld [vmem:[%s228 + $0x2a8] sm:$0xff]
        %v364 = vld [vmem:[%s228 + $0x2b0] sm:$0xff]
        %v365 = vld [vmem:[%s228 + $0x2b8] sm:$0xff]
        %v366 = vld [vmem:[%s228 + $0x2c0] sm:$0xff]
        %v367 = vld [vmem:[%s228 + $0x2c8] sm:$0xff]
        %v368 = vld [vmem:[%s228 + $0x2d0] sm:$0xff]
        %v369 = vld [vmem:[%s228 + $0x2d8] sm:$0xff]
        %v370 = vld [vmem:[%s228 + $0x2e0] sm:$0xff]
        %v371 = vld [vmem:[%s228 + $0x2e8] sm:$0xff]
        %v372 = vld [vmem:[%s228 + $0x2f0] sm:$0xff]
        %v373 = vld [vmem:[%s228 + $0x2f8] sm:$0xff]
        %v374 = vld [vmem:[%s228 + $0x300] sm:$0xff]
        %v375 = vld [vmem:[%s228 + $0x308] sm:$0xff]
        %v376 = vld [vmem:[%s228 + $0x310] sm:$0xff]
        %v377 = vld [vmem:[%s228 + $0x318] sm:$0xff]
        %v378 = vld [vmem:[%s228 + $0x320] sm:$0xff]
        %v379 = vld [vmem:[%s228 + $0x328] sm:$0xff]
        %v380 = vld [vmem:[%s228 + $0x330] sm:$0xff]
        %v381 = vld [vmem:[%s228 + $0x338] sm:$0xff]
        %v382 = vld [vmem:[%s228 + $0x340] sm:$0xff]
        %v383 = vld [vmem:[%s228 + $0x348] sm:$0xff]
        %v384 = vld [vmem:[%s228 + $0x350] sm:$0xff]
        %v385 = vld [vmem:[%s228 + $0x358] sm:$0xff]
        %v386 = vld [vmem:[%s228 + $0x360] sm:$0xff]
        %v387 = vld [vmem:[%s228 + $0x368] sm:$0xff]
        %v388 = vld [vmem:[%s228 + $0x370] sm:$0xff]
        %v389 = vld [vmem:[%s228 + $0x378] sm:$0xff]
        %v390 = vld [vmem:[%s228 + $0x380] sm:$0xff]
        %v391 = vld [vmem:[%s228 + $0x388] sm:$0xff]
        %v392 = vld [vmem:[%s228 + $0x390] sm:$0xff]
        %v393 = vld [vmem:[%s228 + $0x398] sm:$0xff]
        %v394 = vld [vmem:[%s228 + $0x3a0] sm:$0xff]
        %v395 = vld [vmem:[%s228 + $0x3a8] sm:$0xff]
        %v396 = vld [vmem:[%s228 + $0x3b0] sm:$0xff]
        %v397 = vld [vmem:[%s228 + $0x3b8] sm:$0xff]
        %v398 = vld [vmem:[%s228 + $0x3c0] sm:$0xff]
        %v399 = vld [vmem:[%s228 + $0x3c8] sm:$0xff]
        %v400 = vld [vmem:[%s228 + $0x3d0] sm:$0xff]
        %v401 = vld [vmem:[%s228 + $0x3d8] sm:$0xff]
        %v402 = vld [vmem:[%s228 + $0x3e0] sm:$0xff]
        %v403 = vld [vmem:[%s228 + $0x3e8] sm:$0xff]
        %v404 = vld [vmem:[%s228 + $0x3f0] sm:$0xff]
        %v405 = vld [vmem:[%s228 + $0x3f8] sm:$0xff]
        %v406 = vld [vmem:[%s228 + $0x400] sm:$0xff]
        %v407 = vld [vmem:[%s228 + $0x408] sm:$0xff]
        %v408 = vld [vmem:[%s228 + $0x410] sm:$0xff]
        %v409 = vld [vmem:[%s228 + $0x418] sm:$0xff]
        %v410 = vld [vmem:[%s228 + $0x420] sm:$0xff]
        %v411 = vld [vmem:[%s228 + $0x428] sm:$0xff]
        %v412 = vld [vmem:[%s228 + $0x430] sm:$0xff]
        %v413 = vld [vmem:[%s228 + $0x438] sm:$0xff]
        %v414 = vld [vmem:[%s228 + $0x440] sm:$0xff]
        %v415 = vld [vmem:[%s228 + $0x448] sm:$0xff]
        %v416 = vld [vmem:[%s228 + $0x450] sm:$0xff]
        %v417 = vld [vmem:[%s228 + $0x458] sm:$0xff]
        %v418 = vld [vmem:[%s228 + $0x460] sm:$0xff]
        %v419 = vld [vmem:[%s228 + $0x468] sm:$0xff]
        %v420 = vld [vmem:[%s228 + $0x470] sm:$0xff]
        %v421 = vld [vmem:[%s228 + $0x478] sm:$0xff]
        %v422 = vld [vmem:[%s228 + $0x480] sm:$0xff]
        %v423 = vld [vmem:[%s228 + $0x488] sm:$0xff]
        %v424 = vld [vmem:[%s228 + $0x490] sm:$0xff]
        %v425 = vld [vmem:[%s228 + $0x498] sm:$0xff]
        %v426 = vld [vmem:[%s228 + $0x4a0] sm:$0xff]
        %v427 = vld [vmem:[%s228 + $0x4a8] sm:$0xff]
        %v428 = vld [vmem:[%s228 + $0x4b0] sm:$0xff]
        %v429 = vld [vmem:[%s228 + $0x4b8] sm:$0xff]
        %v430 = vld [vmem:[%s228 + $0x4c0] sm:$0xff]
        %v431 = vld [vmem:[%s228 + $0x4c8] sm:$0xff]
        %v432 = vld [vmem:[%s228 + $0x4d0] sm:$0xff]
        %v433 = vld [vmem:[%s228 + $0x4d8] sm:$0xff]
        %v434 = vld [vmem:[%s228 + $0x4e0] sm:$0xff]
        %v435 = vld [vmem:[%s228 + $0x4e8] sm:$0xff]
        %v436 = vld [vmem:[%s228 + $0x4f0] sm:$0xff]
        %v437 = vld [vmem:[%s228 + $0x4f8] sm:$0xff]
        %v438 = vld [vmem:[%s228 + $0x500] sm:$0xff]
        %v439 = vld [vmem:[%s228 + $0x508] sm:$0xff]
        %v440 = vld [vmem:[%s228 + $0x510] sm:$0xff]
        %v441 = vld [vmem:[%s228 + $0x518] sm:$0xff]
        %v442 = vld [vmem:[%s228 + $0x520] sm:$0xff]
        %v443 = vld [vmem:[%s228 + $0x528] sm:$0xff]
        %v444 = vld [vmem:[%s228 + $0x530] sm:$0xff]
        %v445 = vld [vmem:[%s228 + $0x538] sm:$0xff]
        %v446 = vld [vmem:[%s228 + $0x540] sm:$0xff]
        %v447 = vld [vmem:[%s228 + $0x548] sm:$0xff]
        %v448 = vld [vmem:[%s228 + $0x550] sm:$0xff]
        %v449 = vld [vmem:[%s228 + $0x558] sm:$0xff]
        %v450 = vld [vmem:[%s228 + $0x560] sm:$0xff]
        %v451 = vld [vmem:[%s228 + $0x568] sm:$0xff]
        %v452 = vld [vmem:[%s228 + $0x570] sm:$0xff]
        %v453 = vld [vmem:[%s228 + $0x578] sm:$0xff]
        %v454 = vld [vmem:[%s228 + $0x580] sm:$0xff]
        %v455 = vld [vmem:[%s228 + $0x588] sm:$0xff]
        %v456 = vld [vmem:[%s228 + $0x590] sm:$0xff]
        %v457 = vld [vmem:[%s228 + $0x598] sm:$0xff]
        %v458 = vld [vmem:[%s228 + $0x5a0] sm:$0xff]
        %v459 = vld [vmem:[%s228 + $0x5a8] sm:$0xff]
        %v460 = vld [vmem:[%s228 + $0x5b0] sm:$0xff]
        %v461 = vld [vmem:[%s228 + $0x5b8] sm:$0xff]
        %v462 = vld [vmem:[%s228 + $0x5c0] sm:$0xff]
        %v463 = vld [vmem:[%s228 + $0x5c8] sm:$0xff]
        %v464 = vld [vmem:[%s228 + $0x5d0] sm:$0xff]
        %v465 = vld [vmem:[%s228 + $0x5d8] sm:$0xff]
        %v466 = vld [vmem:[%s228 + $0x5e0] sm:$0xff]
        %v467 = vld [vmem:[%s228 + $0x5e8] sm:$0xff]
        %v468 = vld [vmem:[%s228 + $0x5f0] sm:$0xff]
        %v469 = vld [vmem:[%s228 + $0x5f8] sm:$0xff]
        %v470 = vld [vmem:[%s228 + $0x600] sm:$0xff]
        %v471 = vld [vmem:[%s228 + $0x608] sm:$0xff]
        %v472 = vld [vmem:[%s228 + $0x610] sm:$0xff]
        %v473 = vld [vmem:[%s228 + $0x618] sm:$0xff]
        %v474 = vld [vmem:[%s228 + $0x620] sm:$0xff]
        %v475 = vld [vmem:[%s228 + $0x628] sm:$0xff]
        %v476 = vld [vmem:[%s228 + $0x630] sm:$0xff]
        %v477 = vld [vmem:[%s228 + $0x638] sm:$0xff]
        %v478 = vld [vmem:[%s228 + $0x640] sm:$0xff]
        %v479 = vld [vmem:[%s228 + $0x648] sm:$0xff]
        %v480 = vld [vmem:[%s228 + $0x650] sm:$0xff]
        %v481 = vld [vmem:[%s228 + $0x658] sm:$0xff]
        %v482 = vld [vmem:[%s228 + $0x660] sm:$0xff]
        %v483 = vld [vmem:[%s228 + $0x668] sm:$0xff]
        %v484 = vld [vmem:[%s228 + $0x670] sm:$0xff]
        %v485 = vld [vmem:[%s228 + $0x678] sm:$0xff]
        %v486 = vld [vmem:[%s228 + $0x680] sm:$0xff]
        %v487 = vld [vmem:[%s228 + $0x688] sm:$0xff]
        %v488 = vld [vmem:[%s228 + $0x690] sm:$0xff]
        %v489 = vld [vmem:[%s228 + $0x698] sm:$0xff]
        %v490 = vld [vmem:[%s228 + $0x6a0] sm:$0xff]
        %v491 = vld [vmem:[%s228 + $0x6a8] sm:$0xff]
        %v492 = vld [vmem:[%s228 + $0x6b0] sm:$0xff]
        %v493 = vld [vmem:[%s228 + $0x6b8] sm:$0xff]
        %v494 = vld [vmem:[%s228 + $0x6c0] sm:$0xff]
        %v495 = vld [vmem:[%s228 + $0x6c8] sm:$0xff]
        %v496 = vld [vmem:[%s228 + $0x6d0] sm:$0xff]
        %v497 = vld [vmem:[%s228 + $0x6d8] sm:$0xff]
        %v498 = vld [vmem:[%s228 + $0x6e0] sm:$0xff]
        %v499 = vld [vmem:[%s228 + $0x6e8] sm:$0xff]
        %v500 = vld [vmem:[%s228 + $0x6f0] sm:$0xff]
        %v501 = vld [vmem:[%s228 + $0x6f8] sm:$0xff]
        %v502 = vld [vmem:[%s228 + $0x700] sm:$0xff]
        %v503 = vld [vmem:[%s228 + $0x708] sm:$0xff]
        %v504 = vld [vmem:[%s228 + $0x710] sm:$0xff]
        %v505 = vld [vmem:[%s228 + $0x718] sm:$0xff]
        %v506 = vld [vmem:[%s228 + $0x720] sm:$0xff]
        %v507 = vld [vmem:[%s228 + $0x728] sm:$0xff]
        %v508 = vld [vmem:[%s228 + $0x730] sm:$0xff]
        %v509 = vld [vmem:[%s228 + $0x738] sm:$0xff]
        %v510 = vld [vmem:[%s228 + $0x740] sm:$0xff]
        %v511 = vld [vmem:[%s228 + $0x748] sm:$0xff]
        %v512 = vld [vmem:[%s228 + $0x750] sm:$0xff]
        %v513 = vld [vmem:[%s228 + $0x758] sm:$0xff]
        %v514 = vld [vmem:[%s228 + $0x760] sm:$0xff]
        %v515 = vld [vmem:[%s228 + $0x768] sm:$0xff]
        %v516 = vld [vmem:[%s228 + $0x770] sm:$0xff]
        %v517 = vld [vmem:[%s228 + $0x778] sm:$0xff]
        %v518 = vld [vmem:[%s228 + $0x780] sm:$0xff]
        %v519 = vld [vmem:[%s228 + $0x788] sm:$0xff]
        %v520 = vld [vmem:[%s228 + $0x790] sm:$0xff]
        %v521 = vld [vmem:[%s228 + $0x798] sm:$0xff]
        %v522 = vld [vmem:[%s228 + $0x7a0] sm:$0xff]
        %v523 = vld [vmem:[%s228 + $0x7a8] sm:$0xff]
        %v524 = vld [vmem:[%s228 + $0x7b0] sm:$0xff]
        %v525 = vld [vmem:[%s228 + $0x7b8] sm:$0xff]
        %v526 = vld [vmem:[%s228 + $0x7c0] sm:$0xff]
        %v527 = vld [vmem:[%s228 + $0x7c8] sm:$0xff]
        %v528 = vld [vmem:[%s228 + $0x7d0] sm:$0xff]
        %v529 = vld [vmem:[%s228 + $0x7d8] sm:$0xff]
        %v530 = vld [vmem:[%s228 + $0x7e0] sm:$0xff]
        %v531 = vld [vmem:[%s228 + $0x7e8] sm:$0xff]
        %v532 = vld [vmem:[%s228 + $0x7f0] sm:$0xff]
        %v533 = vld [vmem:[%s228 + $0x7f8] sm:$0xff]
        %534 = vmatpush.msra.mxu0 %v398
        %535 = vmatpush.msra.mxu0 %v390
        %536 = vmatpush.msra.mxu0 %v382
        %537 = vmatpush.msra.mxu0 %v374
        %538 = vmatpush.msra.mxu0 %v366
        %539 = vmatpush.msra.mxu0 %v358
        %540 = vmatpush.msra.mxu0 %v350
        %541 = vmatpush.msra.mxu0 %v342
        %542 = vmatpush.msra.mxu0 %v334
        %543 = vmatpush.msra.mxu0 %v326
        %544 = vmatpush.msra.mxu0 %v318
        %545 = vmatpush.msra.mxu0 %v310
        %546 = vmatpush.msra.mxu0 %v302
        %547 = vmatpush.msra.mxu0 %v294
        %548 = vmatpush.msra.mxu0 %v286
        %549 = vmatpush.msra.mxu0 %v278
        %550 = vmatmul.f32.gmra.mxu0 %v274
        %v551 = vpop.f32.mrf.mxu0
        %v552 = vadd.f32 0.0, %v551
        %553 = vmatmul.f32.gmra.mxu0 %v276
        %v554 = vpop.f32.mrf.mxu0
        %v555 = vadd.f32 0.0, %v554
        %556 = vdwg.mxu0
        %557 = vmatpush.msra.mxu0 %v526
        %558 = vmatpush.msra.mxu0 %v518
        %559 = vmatpush.msra.mxu0 %v510
        %560 = vmatpush.msra.mxu0 %v502
        %561 = vmatpush.msra.mxu0 %v494
        %562 = vmatpush.msra.mxu0 %v486
        %563 = vmatpush.msra.mxu0 %v478
        %564 = vmatpush.msra.mxu0 %v470
        %565 = vmatpush.msra.mxu0 %v462
        %566 = vmatpush.msra.mxu0 %v454
        %567 = vmatpush.msra.mxu0 %v446
        %568 = vmatpush.msra.mxu0 %v438
        %569 = vmatpush.msra.mxu0 %v430
        %570 = vmatpush.msra.mxu0 %v422
        %571 = vmatpush.msra.mxu0 %v414
        %572 = vmatpush.msra.mxu0 %v406
        %573 = vmatmul.f32.gmra.mxu0 %v275
        %v574 = vpop.f32.mrf.mxu0
        %v575 = vadd.f32 %v552, %v574
        %576 = vmatmul.f32.gmra.mxu0 %v277
        %v577 = vpop.f32.mrf.mxu0
        %v578 = vadd.f32 %v555, %v577
        %579 = vdwg.mxu0
        %580 = vmatpush.msra.mxu0 %v399
        %581 = vmatpush.msra.mxu0 %v391
        %582 = vmatpush.msra.mxu0 %v383
        %583 = vmatpush.msra.mxu0 %v375
        %584 = vmatpush.msra.mxu0 %v367
        %585 = vmatpush.msra.mxu0 %v359
        %586 = vmatpush.msra.mxu0 %v351
        %587 = vmatpush.msra.mxu0 %v343
        %588 = vmatpush.msra.mxu0 %v335
        %589 = vmatpush.msra.mxu0 %v327
        %590 = vmatpush.msra.mxu0 %v319
        %591 = vmatpush.msra.mxu0 %v311
        %592 = vmatpush.msra.mxu0 %v303
        %593 = vmatpush.msra.mxu0 %v295
        %594 = vmatpush.msra.mxu0 %v287
        %595 = vmatpush.msra.mxu0 %v279
        %596 = vmatmul.f32.gmra.mxu0 %v274
        %v597 = vpop.f32.mrf.mxu0
        %v598 = vadd.f32 0.0, %v597
        %599 = vmatmul.f32.gmra.mxu0 %v276
        %v600 = vpop.f32.mrf.mxu0
        %v601 = vadd.f32 0.0, %v600
        %602 = vdwg.mxu0
        %603 = vmatpush.msra.mxu0 %v527
        %604 = vmatpush.msra.mxu0 %v519
        %605 = vmatpush.msra.mxu0 %v511
        %606 = vmatpush.msra.mxu0 %v503
        %607 = vmatpush.msra.mxu0 %v495
        %608 = vmatpush.msra.mxu0 %v487
        %609 = vmatpush.msra.mxu0 %v479
        %610 = vmatpush.msra.mxu0 %v471
        %611 = vmatpush.msra.mxu0 %v463
        %612 = vmatpush.msra.mxu0 %v455
        %613 = vmatpush.msra.mxu0 %v447
        %614 = vmatpush.msra.mxu0 %v439
        %615 = vmatpush.msra.mxu0 %v431
        %616 = vmatpush.msra.mxu0 %v423
        %617 = vmatpush.msra.mxu0 %v415
        %618 = vmatpush.msra.mxu0 %v407
        %619 = vmatmul.f32.gmra.mxu0 %v275
        %v620 = vpop.f32.mrf.mxu0
        %v621 = vadd.f32 %v598, %v620
        %622 = vmatmul.f32.gmra.mxu0 %v277
        %v623 = vpop.f32.mrf.mxu0
        %v624 = vadd.f32 %v601, %v623
        %625 = vdwg.mxu0
        %626 = vmatpush.msra.mxu0 %v400
        %627 = vmatpush.msra.mxu0 %v392
        %628 = vmatpush.msra.mxu0 %v384
        %629 = vmatpush.msra.mxu0 %v376
        %630 = vmatpush.msra.mxu0 %v368
        %631 = vmatpush.msra.mxu0 %v360
        %632 = vmatpush.msra.mxu0 %v352
        %633 = vmatpush.msra.mxu0 %v344
        %634 = vmatpush.msra.mxu0 %v336
        %635 = vmatpush.msra.mxu0 %v328
        %636 = vmatpush.msra.mxu0 %v320
        %637 = vmatpush.msra.mxu0 %v312
        %638 = vmatpush.msra.mxu0 %v304
        %639 = vmatpush.msra.mxu0 %v296
        %640 = vmatpush.msra.mxu0 %v288
        %641 = vmatpush.msra.mxu0 %v280
        %642 = vmatmul.f32.gmra.mxu0 %v274
        %v643 = vpop.f32.mrf.mxu0
        %v644 = vadd.f32 0.0, %v643
        %645 = vmatmul.f32.gmra.mxu0 %v276
        %v646 = vpop.f32.mrf.mxu0
        %v647 = vadd.f32 0.0, %v646
        %648 = vdwg.mxu0
        %649 = vmatpush.msra.mxu0 %v528
        %650 = vmatpush.msra.mxu0 %v520
        %651 = vmatpush.msra.mxu0 %v512
        %652 = vmatpush.msra.mxu0 %v504
        %653 = vmatpush.msra.mxu0 %v496
        %654 = vmatpush.msra.mxu0 %v488
        %655 = vmatpush.msra.mxu0 %v480
        %656 = vmatpush.msra.mxu0 %v472
        %657 = vmatpush.msra.mxu0 %v464
        %658 = vmatpush.msra.mxu0 %v456
        %659 = vmatpush.msra.mxu0 %v448
        %660 = vmatpush.msra.mxu0 %v440
        %661 = vmatpush.msra.mxu0 %v432
        %662 = vmatpush.msra.mxu0 %v424
        %663 = vmatpush.msra.mxu0 %v416
        %664 = vmatpush.msra.mxu0 %v408
        %665 = vmatmul.f32.gmra.mxu0 %v275
        %v666 = vpop.f32.mrf.mxu0
        %v667 = vadd.f32 %v644, %v666
        %668 = vmatmul.f32.gmra.mxu0 %v277
        %v669 = vpop.f32.mrf.mxu0
        %v670 = vadd.f32 %v647, %v669
        %671 = vdwg.mxu0
        %672 = vmatpush.msra.mxu0 %v401
        %673 = vmatpush.msra.mxu0 %v393
        %674 = vmatpush.msra.mxu0 %v385
        %675 = vmatpush.msra.mxu0 %v377
        %676 = vmatpush.msra.mxu0 %v369
        %677 = vmatpush.msra.mxu0 %v361
        %678 = vmatpush.msra.mxu0 %v353
        %679 = vmatpush.msra.mxu0 %v345
        %680 = vmatpush.msra.mxu0 %v337
        %681 = vmatpush.msra.mxu0 %v329
        %682 = vmatpush.msra.mxu0 %v321
        %683 = vmatpush.msra.mxu0 %v313
        %684 = vmatpush.msra.mxu0 %v305
        %685 = vmatpush.msra.mxu0 %v297
        %686 = vmatpush.msra.mxu0 %v289
        %687 = vmatpush.msra.mxu0 %v281
        %688 = vmatmul.f32.gmra.mxu0 %v274
        %v689 = vpop.f32.mrf.mxu0
        %v690 = vadd.f32 0.0, %v689
        %691 = vmatmul.f32.gmra.mxu0 %v276
        %v692 = vpop.f32.mrf.mxu0
        %v693 = vadd.f32 0.0, %v692
        %694 = vdwg.mxu0
        %695 = vmatpush.msra.mxu0 %v529
        %696 = vmatpush.msra.mxu0 %v521
        %697 = vmatpush.msra.mxu0 %v513
        %698 = vmatpush.msra.mxu0 %v505
        %699 = vmatpush.msra.mxu0 %v497
        %700 = vmatpush.msra.mxu0 %v489
        %701 = vmatpush.msra.mxu0 %v481
        %702 = vmatpush.msra.mxu0 %v473
        %703 = vmatpush.msra.mxu0 %v465
        %704 = vmatpush.msra.mxu0 %v457
        %705 = vmatpush.msra.mxu0 %v449
        %706 = vmatpush.msra.mxu0 %v441
        %707 = vmatpush.msra.mxu0 %v433
        %708 = vmatpush.msra.mxu0 %v425
        %709 = vmatpush.msra.mxu0 %v417
        %710 = vmatpush.msra.mxu0 %v409
        %711 = vmatmul.f32.gmra.mxu0 %v275
        %v712 = vpop.f32.mrf.mxu0
        %v713 = vadd.f32 %v690, %v712
        %714 = vmatmul.f32.gmra.mxu0 %v277
        %v715 = vpop.f32.mrf.mxu0
        %v716 = vadd.f32 %v693, %v715
        %717 = vdwg.mxu0
        %718 = vmatpush.msra.mxu0 %v402
        %719 = vmatpush.msra.mxu0 %v394
        %720 = vmatpush.msra.mxu0 %v386
        %721 = vmatpush.msra.mxu0 %v378
        %722 = vmatpush.msra.mxu0 %v370
        %723 = vmatpush.msra.mxu0 %v362
        %724 = vmatpush.msra.mxu0 %v354
        %725 = vmatpush.msra.mxu0 %v346
        %726 = vmatpush.msra.mxu0 %v338
        %727 = vmatpush.msra.mxu0 %v330
        %728 = vmatpush.msra.mxu0 %v322
        %729 = vmatpush.msra.mxu0 %v314
        %730 = vmatpush.msra.mxu0 %v306
        %731 = vmatpush.msra.mxu0 %v298
        %732 = vmatpush.msra.mxu0 %v290
        %733 = vmatpush.msra.mxu0 %v282
        %734 = vmatmul.f32.gmra.mxu0 %v274
        %v735 = vpop.f32.mrf.mxu0
        %v736 = vadd.f32 0.0, %v735
        %737 = vmatmul.f32.gmra.mxu0 %v276
        %v738 = vpop.f32.mrf.mxu0
        %v739 = vadd.f32 0.0, %v738
        %740 = vdwg.mxu0
        %741 = vmatpush.msra.mxu0 %v530
        %742 = vmatpush.msra.mxu0 %v522
        %743 = vmatpush.msra.mxu0 %v514
        %744 = vmatpush.msra.mxu0 %v506
        %745 = vmatpush.msra.mxu0 %v498
        %746 = vmatpush.msra.mxu0 %v490
        %747 = vmatpush.msra.mxu0 %v482
        %748 = vmatpush.msra.mxu0 %v474
        %749 = vmatpush.msra.mxu0 %v466
        %750 = vmatpush.msra.mxu0 %v458
        %751 = vmatpush.msra.mxu0 %v450
        %752 = vmatpush.msra.mxu0 %v442
        %753 = vmatpush.msra.mxu0 %v434
        %754 = vmatpush.msra.mxu0 %v426
        %755 = vmatpush.msra.mxu0 %v418
        %756 = vmatpush.msra.mxu0 %v410
        %757 = vmatmul.f32.gmra.mxu0 %v275
        %v758 = vpop.f32.mrf.mxu0
        %v759 = vadd.f32 %v736, %v758
        %760 = vmatmul.f32.gmra.mxu0 %v277
        %v761 = vpop.f32.mrf.mxu0
        %v762 = vadd.f32 %v739, %v761
        %763 = vdwg.mxu0
        %764 = vmatpush.msra.mxu0 %v403
        %765 = vmatpush.msra.mxu0 %v395
        %766 = vmatpush.msra.mxu0 %v387
        %767 = vmatpush.msra.mxu0 %v379
        %768 = vmatpush.msra.mxu0 %v371
        %769 = vmatpush.msra.mxu0 %v363
        %770 = vmatpush.msra.mxu0 %v355
        %771 = vmatpush.msra.mxu0 %v347
        %772 = vmatpush.msra.mxu0 %v339
        %773 = vmatpush.msra.mxu0 %v331
        %774 = vmatpush.msra.mxu0 %v323
        %775 = vmatpush.msra.mxu0 %v315
        %776 = vmatpush.msra.mxu0 %v307
        %777 = vmatpush.msra.mxu0 %v299
        %778 = vmatpush.msra.mxu0 %v291
        %779 = vmatpush.msra.mxu0 %v283
        %780 = vmatmul.f32.gmra.mxu0 %v274
        %v781 = vpop.f32.mrf.mxu0
        %v782 = vadd.f32 0.0, %v781
        %783 = vmatmul.f32.gmra.mxu0 %v276
        %v784 = vpop.f32.mrf.mxu0
        %v785 = vadd.f32 0.0, %v784
        %786 = vdwg.mxu0
        %787 = vmatpush.msra.mxu0 %v531
        %788 = vmatpush.msra.mxu0 %v523
        %789 = vmatpush.msra.mxu0 %v515
        %790 = vmatpush.msra.mxu0 %v507
        %791 = vmatpush.msra.mxu0 %v499
        %792 = vmatpush.msra.mxu0 %v491
        %793 = vmatpush.msra.mxu0 %v483
        %794 = vmatpush.msra.mxu0 %v475
        %795 = vmatpush.msra.mxu0 %v467
        %796 = vmatpush.msra.mxu0 %v459
        %797 = vmatpush.msra.mxu0 %v451
        %798 = vmatpush.msra.mxu0 %v443
        %799 = vmatpush.msra.mxu0 %v435
        %800 = vmatpush.msra.mxu0 %v427
        %801 = vmatpush.msra.mxu0 %v419
        %802 = vmatpush.msra.mxu0 %v411
        %803 = vmatmul.f32.gmra.mxu0 %v275
        %v804 = vpop.f32.mrf.mxu0
        %v805 = vadd.f32 %v782, %v804
        %806 = vmatmul.f32.gmra.mxu0 %v277
        %v807 = vpop.f32.mrf.mxu0
        %v808 = vadd.f32 %v785, %v807
        %809 = vdwg.mxu0
        %810 = vmatpush.msra.mxu0 %v404
        %811 = vmatpush.msra.mxu0 %v396
        %812 = vmatpush.msra.mxu0 %v388
        %813 = vmatpush.msra.mxu0 %v380
        %814 = vmatpush.msra.mxu0 %v372
        %815 = vmatpush.msra.mxu0 %v364
        %816 = vmatpush.msra.mxu0 %v356
        %817 = vmatpush.msra.mxu0 %v348
        %818 = vmatpush.msra.mxu0 %v340
        %819 = vmatpush.msra.mxu0 %v332
        %820 = vmatpush.msra.mxu0 %v324
        %821 = vmatpush.msra.mxu0 %v316
        %822 = vmatpush.msra.mxu0 %v308
        %823 = vmatpush.msra.mxu0 %v300
        %824 = vmatpush.msra.mxu0 %v292
        %825 = vmatpush.msra.mxu0 %v284
        %826 = vmatmul.f32.gmra.mxu0 %v274
        %v827 = vpop.f32.mrf.mxu0
        %v828 = vadd.f32 0.0, %v827
        %829 = vmatmul.f32.gmra.mxu0 %v276
        %v830 = vpop.f32.mrf.mxu0
        %v831 = vadd.f32 0.0, %v830
        %832 = vdwg.mxu0
        %833 = vmatpush.msra.mxu0 %v532
        %834 = vmatpush.msra.mxu0 %v524
        %835 = vmatpush.msra.mxu0 %v516
        %836 = vmatpush.msra.mxu0 %v508
        %837 = vmatpush.msra.mxu0 %v500
        %838 = vmatpush.msra.mxu0 %v492
        %839 = vmatpush.msra.mxu0 %v484
        %840 = vmatpush.msra.mxu0 %v476
        %841 = vmatpush.msra.mxu0 %v468
        %842 = vmatpush.msra.mxu0 %v460
        %843 = vmatpush.msra.mxu0 %v452
        %844 = vmatpush.msra.mxu0 %v444
        %845 = vmatpush.msra.mxu0 %v436
        %846 = vmatpush.msra.mxu0 %v428
        %847 = vmatpush.msra.mxu0 %v420
        %848 = vmatpush.msra.mxu0 %v412
        %849 = vmatmul.f32.gmra.mxu0 %v275
        %v850 = vpop.f32.mrf.mxu0
        %v851 = vadd.f32 %v828, %v850
        %852 = vmatmul.f32.gmra.mxu0 %v277
        %v853 = vpop.f32.mrf.mxu0
        %v854 = vadd.f32 %v831, %v853
        %855 = vdwg.mxu0
        %856 = vmatpush.msra.mxu0 %v405
        %857 = vmatpush.msra.mxu0 %v397
        %858 = vmatpush.msra.mxu0 %v389
        %859 = vmatpush.msra.mxu0 %v381
        %860 = vmatpush.msra.mxu0 %v373
        %861 = vmatpush.msra.mxu0 %v365
        %862 = vmatpush.msra.mxu0 %v357
        %863 = vmatpush.msra.mxu0 %v349
        %864 = vmatpush.msra.mxu0 %v341
        %865 = vmatpush.msra.mxu0 %v333
        %866 = vmatpush.msra.mxu0 %v325
        %867 = vmatpush.msra.mxu0 %v317
        %868 = vmatpush.msra.mxu0 %v309
        %869 = vmatpush.msra.mxu0 %v301
        %870 = vmatpush.msra.mxu0 %v293
        %871 = vmatpush.msra.mxu0 %v285
        %872 = vmatmul.f32.gmra.mxu0 %v274
        %v873 = vpop.f32.mrf.mxu0
        %v874 = vadd.f32 0.0, %v873
        %875 = vmatmul.f32.gmra.mxu0 %v276
        %v876 = vpop.f32.mrf.mxu0
        %v877 = vadd.f32 0.0, %v876
        %878 = vdwg.mxu0
        %879 = vmatpush.msra.mxu0 %v533
        %880 = vmatpush.msra.mxu0 %v525
        %881 = vmatpush.msra.mxu0 %v517
        %882 = vmatpush.msra.mxu0 %v509
        %883 = vmatpush.msra.mxu0 %v501
        %884 = vmatpush.msra.mxu0 %v493
        %885 = vmatpush.msra.mxu0 %v485
        %886 = vmatpush.msra.mxu0 %v477
        %887 = vmatpush.msra.mxu0 %v469
        %888 = vmatpush.msra.mxu0 %v461
        %889 = vmatpush.msra.mxu0 %v453
        %890 = vmatpush.msra.mxu0 %v445
        %891 = vmatpush.msra.mxu0 %v437
        %892 = vmatpush.msra.mxu0 %v429
        %893 = vmatpush.msra.mxu0 %v421
        %894 = vmatpush.msra.mxu0 %v413
        %895 = vmatmul.f32.gmra.mxu0 %v275
        %v896 = vpop.f32.mrf.mxu0
        %v897 = vadd.f32 %v874, %v896
        %898 = vmatmul.f32.gmra.mxu0 %v277
        %v899 = vpop.f32.mrf.mxu0
        %v900 = vadd.f32 %v877, %v899
        %901 = vdwg.mxu0
        %v902 = vxor.u32 %v575, 2147483648
        %v903 = vxor.u32 %v621, 2147483648
        %v904 = vxor.u32 %v667, 2147483648
        %v905 = vxor.u32 %v713, 2147483648
        %v906 = vxor.u32 %v578, 2147483648
        %v907 = vxor.u32 %v624, 2147483648
        %v908 = vxor.u32 %v670, 2147483648
        %v909 = vxor.u32 %v716, 2147483648
        %v910 = vmul.f32 %v902, 1.442695
        %v911 = vpow.pop %v910
        %v912 = vmul.f32 %v903, 1.442695
        %v913 = vpow.pop %v912
        %v914 = vmul.f32 %v904, 1.442695
        %v915 = vpow.pop %v914
        %v916 = vmul.f32 %v905, 1.442695
        %v917 = vpow.pop %v916
        %v918 = vmul.f32 %v906, 1.442695
        %v919 = vpow.pop %v918
        %v920 = vmul.f32 %v907, 1.442695
        %v921 = vpow.pop %v920
        %v922 = vmul.f32 %v908, 1.442695
        %v923 = vpow.pop %v922
        %v924 = vmul.f32 %v909, 1.442695
        %v925 = vpow.pop %v924
        %v926 = vadd.f32 %v911, 1.0
        %v927 = vadd.f32 %v913, 1.0
        %v928 = vadd.f32 %v915, 1.0
        %v929 = vadd.f32 %v917, 1.0
        %v930 = vadd.f32 %v919, 1.0
        %v931 = vadd.f32 %v921, 1.0
        %v932 = vadd.f32 %v923, 1.0
        %v933 = vadd.f32 %v925, 1.0
        %v934 = vrcp.pop %v926
        %v935 = vmul.f32 %v926, %v934
        %v936 = vsub.f32 1.0, %v935
        %v937 = vmul.f32 %v934, %v936
        %v938 = vadd.f32 %v934, %v937
        %vm939 = vweird.f32 %v926
        %vm940 = vweird.f32 %v934
        %vm941 = vmor %vm939, %vm940
        %v942 = vsel %vm941, %v934, %v938
        %v943 = vand.u32 2147483647, %v926
        %vm944 = vcmp.eq.f32.partialorder %v943, 8.507059e+37
        %v945 = vand.u32 %v926, 2147483648
        %v946 = vor.u32 1.1754944e-38, %v945
        %v947 = vsel %vm944, %v946, %v942
        %v948 = vmul.f32 1.0, %v947
        %v949 = vrcp.pop %v927
        %v950 = vmul.f32 %v927, %v949
        %v951 = vsub.f32 1.0, %v950
        %v952 = vmul.f32 %v949, %v951
        %v953 = vadd.f32 %v949, %v952
        %vm954 = vweird.f32 %v927
        %vm955 = vweird.f32 %v949
        %vm956 = vmor %vm954, %vm955
        %v957 = vsel %vm956, %v949, %v953
        %v958 = vand.u32 2147483647, %v927
        %vm959 = vcmp.eq.f32.partialorder %v958, 8.507059e+37
        %v960 = vand.u32 %v927, 2147483648
        %v961 = vor.u32 1.1754944e-38, %v960
        %v962 = vsel %vm959, %v961, %v957
        %v963 = vmul.f32 1.0, %v962
        %v964 = vrcp.pop %v928
        %v965 = vmul.f32 %v928, %v964
        %v966 = vsub.f32 1.0, %v965
        %v967 = vmul.f32 %v964, %v966
        %v968 = vadd.f32 %v964, %v967
        %vm969 = vweird.f32 %v928
        %vm970 = vweird.f32 %v964
        %vm971 = vmor %vm969, %vm970
        %v972 = vsel %vm971, %v964, %v968
        %v973 = vand.u32 2147483647, %v928
        %vm974 = vcmp.eq.f32.partialorder %v973, 8.507059e+37
        %v975 = vand.u32 %v928, 2147483648
        %v976 = vor.u32 1.1754944e-38, %v975
        %v977 = vsel %vm974, %v976, %v972
        %v978 = vmul.f32 1.0, %v977
        %v979 = vrcp.pop %v929
        %v980 = vmul.f32 %v929, %v979
        %v981 = vsub.f32 1.0, %v980
        %v982 = vmul.f32 %v979, %v981
        %v983 = vadd.f32 %v979, %v982
        %vm984 = vweird.f32 %v929
        %vm985 = vweird.f32 %v979
        %vm986 = vmor %vm984, %vm985
        %v987 = vsel %vm986, %v979, %v983
        %v988 = vand.u32 2147483647, %v929
        %vm989 = vcmp.eq.f32.partialorder %v988, 8.507059e+37
        %v990 = vand.u32 %v929, 2147483648
        %v991 = vor.u32 1.1754944e-38, %v990
        %v992 = vsel %vm989, %v991, %v987
        %v993 = vmul.f32 1.0, %v992
        %v994 = vrcp.pop %v930
        %v995 = vmul.f32 %v930, %v994
        %v996 = vsub.f32 1.0, %v995
        %v997 = vmul.f32 %v994, %v996
        %v998 = vadd.f32 %v994, %v997
        %vm999 = vweird.f32 %v930
        %vm1000 = vweird.f32 %v994
        %vm1001 = vmor %vm999, %vm1000
        %v1002 = vsel %vm1001, %v994, %v998
        %v1003 = vand.u32 2147483647, %v930
        %vm1004 = vcmp.eq.f32.partialorder %v1003, 8.507059e+37
        %v1005 = vand.u32 %v930, 2147483648
        %v1006 = vor.u32 1.1754944e-38, %v1005
        %v1007 = vsel %vm1004, %v1006, %v1002
        %v1008 = vmul.f32 1.0, %v1007
        %v1009 = vrcp.pop %v931
        %v1010 = vmul.f32 %v931, %v1009
        %v1011 = vsub.f32 1.0, %v1010
        %v1012 = vmul.f32 %v1009, %v1011
        %v1013 = vadd.f32 %v1009, %v1012
        %vm1014 = vweird.f32 %v931
        %vm1015 = vweird.f32 %v1009
        %vm1016 = vmor %vm1014, %vm1015
        %v1017 = vsel %vm1016, %v1009, %v1013
        %v1018 = vand.u32 2147483647, %v931
        %vm1019 = vcmp.eq.f32.partialorder %v1018, 8.507059e+37
        %v1020 = vand.u32 %v931, 2147483648
        %v1021 = vor.u32 1.1754944e-38, %v1020
        %v1022 = vsel %vm1019, %v1021, %v1017
        %v1023 = vmul.f32 1.0, %v1022
        %v1024 = vrcp.pop %v932
        %v1025 = vmul.f32 %v932, %v1024
        %v1026 = vsub.f32 1.0, %v1025
        %v1027 = vmul.f32 %v1024, %v1026
        %v1028 = vadd.f32 %v1024, %v1027
        %vm1029 = vweird.f32 %v932
        %vm1030 = vweird.f32 %v1024
        %vm1031 = vmor %vm1029, %vm1030
        %v1032 = vsel %vm1031, %v1024, %v1028
        %v1033 = vand.u32 2147483647, %v932
        %vm1034 = vcmp.eq.f32.partialorder %v1033, 8.507059e+37
        %v1035 = vand.u32 %v932, 2147483648
        %v1036 = vor.u32 1.1754944e-38, %v1035
        %v1037 = vsel %vm1034, %v1036, %v1032
        %v1038 = vmul.f32 1.0, %v1037
        %v1039 = vrcp.pop %v933
        %v1040 = vmul.f32 %v933, %v1039
        %v1041 = vsub.f32 1.0, %v1040
        %v1042 = vmul.f32 %v1039, %v1041
        %v1043 = vadd.f32 %v1039, %v1042
        %vm1044 = vweird.f32 %v933
        %vm1045 = vweird.f32 %v1039
        %vm1046 = vmor %vm1044, %vm1045
        %v1047 = vsel %vm1046, %v1039, %v1043
        %v1048 = vand.u32 2147483647, %v933
        %vm1049 = vcmp.eq.f32.partialorder %v1048, 8.507059e+37
        %v1050 = vand.u32 %v933, 2147483648
        %v1051 = vor.u32 1.1754944e-38, %v1050
        %v1052 = vsel %vm1049, %v1051, %v1047
        %v1053 = vmul.f32 1.0, %v1052
        %v1054 = vmul.f32 %v575, %v948
        %v1055 = vmul.f32 %v621, %v963
        %v1056 = vmul.f32 %v667, %v978
        %v1057 = vmul.f32 %v713, %v993
        %v1058 = vmul.f32 %v578, %v1008
        %v1059 = vmul.f32 %v624, %v1023
        %v1060 = vmul.f32 %v670, %v1038
        %v1061 = vmul.f32 %v716, %v1053
        %v1062 = vmul.f32 %v1054, %v759
        %v1063 = vmul.f32 %v1055, %v805
        %v1064 = vmul.f32 %v1056, %v851
        %v1065 = vmul.f32 %v1057, %v897
        %v1066 = vmul.f32 %v1058, %v762
        %v1067 = vmul.f32 %v1059, %v808
        %v1068 = vmul.f32 %v1060, %v854
        %v1069 = vmul.f32 %v1061, %v900
        %v1070 = vld [vmem:[%s238] sm:$0xff]
        %v1071 = vld [vmem:[%s238 + $0x8] sm:$0xff]
        %v1072 = vld [vmem:[%s238 + $0x10] sm:$0xff]
        %v1073 = vld [vmem:[%s238 + $0x18] sm:$0xff]
        %v1074 = vld [vmem:[%s238 + $0x20] sm:$0xff]
        %v1075 = vld [vmem:[%s238 + $0x28] sm:$0xff]
        %v1076 = vld [vmem:[%s238 + $0x30] sm:$0xff]
        %v1077 = vld [vmem:[%s238 + $0x38] sm:$0xff]
        %v1078 = vld [vmem:[%s238 + $0x40] sm:$0xff]
        %v1079 = vld [vmem:[%s238 + $0x48] sm:$0xff]
        %v1080 = vld [vmem:[%s238 + $0x50] sm:$0xff]
        %v1081 = vld [vmem:[%s238 + $0x58] sm:$0xff]
        %v1082 = vld [vmem:[%s238 + $0x60] sm:$0xff]
        %v1083 = vld [vmem:[%s238 + $0x68] sm:$0xff]
        %v1084 = vld [vmem:[%s238 + $0x70] sm:$0xff]
        %v1085 = vld [vmem:[%s238 + $0x78] sm:$0xff]
        %v1086 = vld [vmem:[%s238 + $0x80] sm:$0xff]
        %v1087 = vld [vmem:[%s238 + $0x88] sm:$0xff]
        %v1088 = vld [vmem:[%s238 + $0x90] sm:$0xff]
        %v1089 = vld [vmem:[%s238 + $0x98] sm:$0xff]
        %v1090 = vld [vmem:[%s238 + $0xa0] sm:$0xff]
        %v1091 = vld [vmem:[%s238 + $0xa8] sm:$0xff]
        %v1092 = vld [vmem:[%s238 + $0xb0] sm:$0xff]
        %v1093 = vld [vmem:[%s238 + $0xb8] sm:$0xff]
        %v1094 = vld [vmem:[%s238 + $0xc0] sm:$0xff]
        %v1095 = vld [vmem:[%s238 + $0xc8] sm:$0xff]
        %v1096 = vld [vmem:[%s238 + $0xd0] sm:$0xff]
        %v1097 = vld [vmem:[%s238 + $0xd8] sm:$0xff]
        %v1098 = vld [vmem:[%s238 + $0xe0] sm:$0xff]
        %v1099 = vld [vmem:[%s238 + $0xe8] sm:$0xff]
        %v1100 = vld [vmem:[%s238 + $0xf0] sm:$0xff]
        %v1101 = vld [vmem:[%s238 + $0xf8] sm:$0xff]
        %v1102 = vld [vmem:[%s238 + $0x100] sm:$0xff]
        %v1103 = vld [vmem:[%s238 + $0x108] sm:$0xff]
        %v1104 = vld [vmem:[%s238 + $0x110] sm:$0xff]
        %v1105 = vld [vmem:[%s238 + $0x118] sm:$0xff]
        %v1106 = vld [vmem:[%s238 + $0x120] sm:$0xff]
        %v1107 = vld [vmem:[%s238 + $0x128] sm:$0xff]
        %v1108 = vld [vmem:[%s238 + $0x130] sm:$0xff]
        %v1109 = vld [vmem:[%s238 + $0x138] sm:$0xff]
        %v1110 = vld [vmem:[%s238 + $0x140] sm:$0xff]
        %v1111 = vld [vmem:[%s238 + $0x148] sm:$0xff]
        %v1112 = vld [vmem:[%s238 + $0x150] sm:$0xff]
        %v1113 = vld [vmem:[%s238 + $0x158] sm:$0xff]
        %v1114 = vld [vmem:[%s238 + $0x160] sm:$0xff]
        %v1115 = vld [vmem:[%s238 + $0x168] sm:$0xff]
        %v1116 = vld [vmem:[%s238 + $0x170] sm:$0xff]
        %v1117 = vld [vmem:[%s238 + $0x178] sm:$0xff]
        %v1118 = vld [vmem:[%s238 + $0x180] sm:$0xff]
        %v1119 = vld [vmem:[%s238 + $0x188] sm:$0xff]
        %v1120 = vld [vmem:[%s238 + $0x190] sm:$0xff]
        %v1121 = vld [vmem:[%s238 + $0x198] sm:$0xff]
        %v1122 = vld [vmem:[%s238 + $0x1a0] sm:$0xff]
        %v1123 = vld [vmem:[%s238 + $0x1a8] sm:$0xff]
        %v1124 = vld [vmem:[%s238 + $0x1b0] sm:$0xff]
        %v1125 = vld [vmem:[%s238 + $0x1b8] sm:$0xff]
        %v1126 = vld [vmem:[%s238 + $0x1c0] sm:$0xff]
        %v1127 = vld [vmem:[%s238 + $0x1c8] sm:$0xff]
        %v1128 = vld [vmem:[%s238 + $0x1d0] sm:$0xff]
        %v1129 = vld [vmem:[%s238 + $0x1d8] sm:$0xff]
        %v1130 = vld [vmem:[%s238 + $0x1e0] sm:$0xff]
        %v1131 = vld [vmem:[%s238 + $0x1e8] sm:$0xff]
        %v1132 = vld [vmem:[%s238 + $0x1f0] sm:$0xff]
        %v1133 = vld [vmem:[%s238 + $0x1f8] sm:$0xff]
        %v1134 = vld [vmem:[%s238 + $0x200] sm:$0xff]
        %v1135 = vld [vmem:[%s238 + $0x208] sm:$0xff]
        %v1136 = vld [vmem:[%s238 + $0x210] sm:$0xff]
        %v1137 = vld [vmem:[%s238 + $0x218] sm:$0xff]
        %v1138 = vld [vmem:[%s238 + $0x220] sm:$0xff]
        %v1139 = vld [vmem:[%s238 + $0x228] sm:$0xff]
        %v1140 = vld [vmem:[%s238 + $0x230] sm:$0xff]
        %v1141 = vld [vmem:[%s238 + $0x238] sm:$0xff]
        %v1142 = vld [vmem:[%s238 + $0x240] sm:$0xff]
        %v1143 = vld [vmem:[%s238 + $0x248] sm:$0xff]
        %v1144 = vld [vmem:[%s238 + $0x250] sm:$0xff]
        %v1145 = vld [vmem:[%s238 + $0x258] sm:$0xff]
        %v1146 = vld [vmem:[%s238 + $0x260] sm:$0xff]
        %v1147 = vld [vmem:[%s238 + $0x268] sm:$0xff]
        %v1148 = vld [vmem:[%s238 + $0x270] sm:$0xff]
        %v1149 = vld [vmem:[%s238 + $0x278] sm:$0xff]
        %v1150 = vld [vmem:[%s238 + $0x280] sm:$0xff]
        %v1151 = vld [vmem:[%s238 + $0x288] sm:$0xff]
        %v1152 = vld [vmem:[%s238 + $0x290] sm:$0xff]
        %v1153 = vld [vmem:[%s238 + $0x298] sm:$0xff]
        %v1154 = vld [vmem:[%s238 + $0x2a0] sm:$0xff]
        %v1155 = vld [vmem:[%s238 + $0x2a8] sm:$0xff]
        %v1156 = vld [vmem:[%s238 + $0x2b0] sm:$0xff]
        %v1157 = vld [vmem:[%s238 + $0x2b8] sm:$0xff]
        %v1158 = vld [vmem:[%s238 + $0x2c0] sm:$0xff]
        %v1159 = vld [vmem:[%s238 + $0x2c8] sm:$0xff]
        %v1160 = vld [vmem:[%s238 + $0x2d0] sm:$0xff]
        %v1161 = vld [vmem:[%s238 + $0x2d8] sm:$0xff]
        %v1162 = vld [vmem:[%s238 + $0x2e0] sm:$0xff]
        %v1163 = vld [vmem:[%s238 + $0x2e8] sm:$0xff]
        %v1164 = vld [vmem:[%s238 + $0x2f0] sm:$0xff]
        %v1165 = vld [vmem:[%s238 + $0x2f8] sm:$0xff]
        %v1166 = vld [vmem:[%s238 + $0x300] sm:$0xff]
        %v1167 = vld [vmem:[%s238 + $0x308] sm:$0xff]
        %v1168 = vld [vmem:[%s238 + $0x310] sm:$0xff]
        %v1169 = vld [vmem:[%s238 + $0x318] sm:$0xff]
        %v1170 = vld [vmem:[%s238 + $0x320] sm:$0xff]
        %v1171 = vld [vmem:[%s238 + $0x328] sm:$0xff]
        %v1172 = vld [vmem:[%s238 + $0x330] sm:$0xff]
        %v1173 = vld [vmem:[%s238 + $0x338] sm:$0xff]
        %v1174 = vld [vmem:[%s238 + $0x340] sm:$0xff]
        %v1175 = vld [vmem:[%s238 + $0x348] sm:$0xff]
        %v1176 = vld [vmem:[%s238 + $0x350] sm:$0xff]
        %v1177 = vld [vmem:[%s238 + $0x358] sm:$0xff]
        %v1178 = vld [vmem:[%s238 + $0x360] sm:$0xff]
        %v1179 = vld [vmem:[%s238 + $0x368] sm:$0xff]
        %v1180 = vld [vmem:[%s238 + $0x370] sm:$0xff]
        %v1181 = vld [vmem:[%s238 + $0x378] sm:$0xff]
        %v1182 = vld [vmem:[%s238 + $0x380] sm:$0xff]
        %v1183 = vld [vmem:[%s238 + $0x388] sm:$0xff]
        %v1184 = vld [vmem:[%s238 + $0x390] sm:$0xff]
        %v1185 = vld [vmem:[%s238 + $0x398] sm:$0xff]
        %v1186 = vld [vmem:[%s238 + $0x3a0] sm:$0xff]
        %v1187 = vld [vmem:[%s238 + $0x3a8] sm:$0xff]
        %v1188 = vld [vmem:[%s238 + $0x3b0] sm:$0xff]
        %v1189 = vld [vmem:[%s238 + $0x3b8] sm:$0xff]
        %v1190 = vld [vmem:[%s238 + $0x3c0] sm:$0xff]
        %v1191 = vld [vmem:[%s238 + $0x3c8] sm:$0xff]
        %v1192 = vld [vmem:[%s238 + $0x3d0] sm:$0xff]
        %v1193 = vld [vmem:[%s238 + $0x3d8] sm:$0xff]
        %v1194 = vld [vmem:[%s238 + $0x3e0] sm:$0xff]
        %v1195 = vld [vmem:[%s238 + $0x3e8] sm:$0xff]
        %v1196 = vld [vmem:[%s238 + $0x3f0] sm:$0xff]
        %v1197 = vld [vmem:[%s238 + $0x3f8] sm:$0xff]
        %1198 = vmatpush.msra.mxu0 %v1100
        %1199 = vmatpush.msra.mxu0 %v1098
        %1200 = vmatpush.msra.mxu0 %v1096
        %1201 = vmatpush.msra.mxu0 %v1094
        %1202 = vmatpush.msra.mxu0 %v1092
        %1203 = vmatpush.msra.mxu0 %v1090
        %1204 = vmatpush.msra.mxu0 %v1088
        %1205 = vmatpush.msra.mxu0 %v1086
        %1206 = vmatpush.msra.mxu0 %v1084
        %1207 = vmatpush.msra.mxu0 %v1082
        %1208 = vmatpush.msra.mxu0 %v1080
        %1209 = vmatpush.msra.mxu0 %v1078
        %1210 = vmatpush.msra.mxu0 %v1076
        %1211 = vmatpush.msra.mxu0 %v1074
        %1212 = vmatpush.msra.mxu0 %v1072
        %1213 = vmatpush.msra.mxu0 %v1070
        %1214 = vmatmul.f32.gmra.mxu0 %v1062
        %v1215 = vpop.f32.mrf.mxu0
        %v1216 = vadd.f32 0.0, %v1215
        %1217 = vmatmul.f32.gmra.mxu0 %v1066
        %v1218 = vpop.f32.mrf.mxu0
        %v1219 = vadd.f32 0.0, %v1218
        %1220 = vdwg.mxu0
        %1221 = vmatpush.msra.mxu0 %v1132
        %1222 = vmatpush.msra.mxu0 %v1130
        %1223 = vmatpush.msra.mxu0 %v1128
        %1224 = vmatpush.msra.mxu0 %v1126
        %1225 = vmatpush.msra.mxu0 %v1124
        %1226 = vmatpush.msra.mxu0 %v1122
        %1227 = vmatpush.msra.mxu0 %v1120
        %1228 = vmatpush.msra.mxu0 %v1118
        %1229 = vmatpush.msra.mxu0 %v1116
        %1230 = vmatpush.msra.mxu0 %v1114
        %1231 = vmatpush.msra.mxu0 %v1112
        %1232 = vmatpush.msra.mxu0 %v1110
        %1233 = vmatpush.msra.mxu0 %v1108
        %1234 = vmatpush.msra.mxu0 %v1106
        %1235 = vmatpush.msra.mxu0 %v1104
        %1236 = vmatpush.msra.mxu0 %v1102
        %1237 = vmatmul.f32.gmra.mxu0 %v1063
        %v1238 = vpop.f32.mrf.mxu0
        %v1239 = vadd.f32 %v1216, %v1238
        %1240 = vmatmul.f32.gmra.mxu0 %v1067
        %v1241 = vpop.f32.mrf.mxu0
        %v1242 = vadd.f32 %v1219, %v1241
        %1243 = vdwg.mxu0
        %1244 = vmatpush.msra.mxu0 %v1164
        %1245 = vmatpush.msra.mxu0 %v1162
        %1246 = vmatpush.msra.mxu0 %v1160
        %1247 = vmatpush.msra.mxu0 %v1158
        %1248 = vmatpush.msra.mxu0 %v1156
        %1249 = vmatpush.msra.mxu0 %v1154
        %1250 = vmatpush.msra.mxu0 %v1152
        %1251 = vmatpush.msra.mxu0 %v1150
        %1252 = vmatpush.msra.mxu0 %v1148
        %1253 = vmatpush.msra.mxu0 %v1146
        %1254 = vmatpush.msra.mxu0 %v1144
        %1255 = vmatpush.msra.mxu0 %v1142
        %1256 = vmatpush.msra.mxu0 %v1140
        %1257 = vmatpush.msra.mxu0 %v1138
        %1258 = vmatpush.msra.mxu0 %v1136
        %1259 = vmatpush.msra.mxu0 %v1134
        %1260 = vmatmul.f32.gmra.mxu0 %v1064
        %v1261 = vpop.f32.mrf.mxu0
        %v1262 = vadd.f32 %v1239, %v1261
        %1263 = vmatmul.f32.gmra.mxu0 %v1068
        %v1264 = vpop.f32.mrf.mxu0
        %v1265 = vadd.f32 %v1242, %v1264
        %1266 = vdwg.mxu0
        %1267 = vmatpush.msra.mxu0 %v1196
        %1268 = vmatpush.msra.mxu0 %v1194
        %1269 = vmatpush.msra.mxu0 %v1192
        %1270 = vmatpush.msra.mxu0 %v1190
        %1271 = vmatpush.msra.mxu0 %v1188
        %1272 = vmatpush.msra.mxu0 %v1186
        %1273 = vmatpush.msra.mxu0 %v1184
        %1274 = vmatpush.msra.mxu0 %v1182
        %1275 = vmatpush.msra.mxu0 %v1180
        %1276 = vmatpush.msra.mxu0 %v1178
        %1277 = vmatpush.msra.mxu0 %v1176
        %1278 = vmatpush.msra.mxu0 %v1174
        %1279 = vmatpush.msra.mxu0 %v1172
        %1280 = vmatpush.msra.mxu0 %v1170
        %1281 = vmatpush.msra.mxu0 %v1168
        %1282 = vmatpush.msra.mxu0 %v1166
        %1283 = vmatmul.f32.gmra.mxu0 %v1065
        %v1284 = vpop.f32.mrf.mxu0
        %v1285 = vadd.f32 %v1262, %v1284
        %1286 = vmatmul.f32.gmra.mxu0 %v1069
        %v1287 = vpop.f32.mrf.mxu0
        %v1288 = vadd.f32 %v1265, %v1287
        %1289 = vdwg.mxu0
        %1290 = vmatpush.msra.mxu0 %v1101
        %1291 = vmatpush.msra.mxu0 %v1099
        %1292 = vmatpush.msra.mxu0 %v1097
        %1293 = vmatpush.msra.mxu0 %v1095
        %1294 = vmatpush.msra.mxu0 %v1093
        %1295 = vmatpush.msra.mxu0 %v1091
        %1296 = vmatpush.msra.mxu0 %v1089
        %1297 = vmatpush.msra.mxu0 %v1087
        %1298 = vmatpush.msra.mxu0 %v1085
        %1299 = vmatpush.msra.mxu0 %v1083
        %1300 = vmatpush.msra.mxu0 %v1081
        %1301 = vmatpush.msra.mxu0 %v1079
        %1302 = vmatpush.msra.mxu0 %v1077
        %1303 = vmatpush.msra.mxu0 %v1075
        %1304 = vmatpush.msra.mxu0 %v1073
        %1305 = vmatpush.msra.mxu0 %v1071
        %1306 = vmatmul.f32.gmra.mxu0 %v1062
        %v1307 = vpop.f32.mrf.mxu0
        %v1308 = vadd.f32 0.0, %v1307
        %1309 = vmatmul.f32.gmra.mxu0 %v1066
        %v1310 = vpop.f32.mrf.mxu0
        %v1311 = vadd.f32 0.0, %v1310
        %1312 = vdwg.mxu0
        %1313 = vmatpush.msra.mxu0 %v1133
        %1314 = vmatpush.msra.mxu0 %v1131
        %1315 = vmatpush.msra.mxu0 %v1129
        %1316 = vmatpush.msra.mxu0 %v1127
        %1317 = vmatpush.msra.mxu0 %v1125
        %1318 = vmatpush.msra.mxu0 %v1123
        %1319 = vmatpush.msra.mxu0 %v1121
        %1320 = vmatpush.msra.mxu0 %v1119
        %1321 = vmatpush.msra.mxu0 %v1117
        %1322 = vmatpush.msra.mxu0 %v1115
        %1323 = vmatpush.msra.mxu0 %v1113
        %1324 = vmatpush.msra.mxu0 %v1111
        %1325 = vmatpush.msra.mxu0 %v1109
        %1326 = vmatpush.msra.mxu0 %v1107
        %1327 = vmatpush.msra.mxu0 %v1105
        %1328 = vmatpush.msra.mxu0 %v1103
        %1329 = vmatmul.f32.gmra.mxu0 %v1063
        %v1330 = vpop.f32.mrf.mxu0
        %v1331 = vadd.f32 %v1308, %v1330
        %1332 = vmatmul.f32.gmra.mxu0 %v1067
        %v1333 = vpop.f32.mrf.mxu0
        %v1334 = vadd.f32 %v1311, %v1333
        %1335 = vdwg.mxu0
        %1336 = vmatpush.msra.mxu0 %v1165
        %1337 = vmatpush.msra.mxu0 %v1163
        %1338 = vmatpush.msra.mxu0 %v1161
        %1339 = vmatpush.msra.mxu0 %v1159
        %1340 = vmatpush.msra.mxu0 %v1157
        %1341 = vmatpush.msra.mxu0 %v1155
        %1342 = vmatpush.msra.mxu0 %v1153
        %1343 = vmatpush.msra.mxu0 %v1151
        %1344 = vmatpush.msra.mxu0 %v1149
        %1345 = vmatpush.msra.mxu0 %v1147
        %1346 = vmatpush.msra.mxu0 %v1145
        %1347 = vmatpush.msra.mxu0 %v1143
        %1348 = vmatpush.msra.mxu0 %v1141
        %1349 = vmatpush.msra.mxu0 %v1139
        %1350 = vmatpush.msra.mxu0 %v1137
        %1351 = vmatpush.msra.mxu0 %v1135
        %1352 = vmatmul.f32.gmra.mxu0 %v1064
        %v1353 = vpop.f32.mrf.mxu0
        %v1354 = vadd.f32 %v1331, %v1353
        %1355 = vmatmul.f32.gmra.mxu0 %v1068
        %v1356 = vpop.f32.mrf.mxu0
        %v1357 = vadd.f32 %v1334, %v1356
        %1358 = vdwg.mxu0
        %1359 = vmatpush.msra.mxu0 %v1197
        %1360 = vmatpush.msra.mxu0 %v1195
        %1361 = vmatpush.msra.mxu0 %v1193
        %1362 = vmatpush.msra.mxu0 %v1191
        %1363 = vmatpush.msra.mxu0 %v1189
        %1364 = vmatpush.msra.mxu0 %v1187
        %1365 = vmatpush.msra.mxu0 %v1185
        %1366 = vmatpush.msra.mxu0 %v1183
        %1367 = vmatpush.msra.mxu0 %v1181
        %1368 = vmatpush.msra.mxu0 %v1179
        %1369 = vmatpush.msra.mxu0 %v1177
        %1370 = vmatpush.msra.mxu0 %v1175
        %1371 = vmatpush.msra.mxu0 %v1173
        %1372 = vmatpush.msra.mxu0 %v1171
        %1373 = vmatpush.msra.mxu0 %v1169
        %1374 = vmatpush.msra.mxu0 %v1167
        %1375 = vmatmul.f32.gmra.mxu0 %v1065
        %v1376 = vpop.f32.mrf.mxu0
        %v1377 = vadd.f32 %v1354, %v1376
        %1378 = vmatmul.f32.gmra.mxu0 %v1069
        %v1379 = vpop.f32.mrf.mxu0
        %v1380 = vadd.f32 %v1357, %v1379
        %1381 = vdwg.mxu0
        %p1382 = scmp.ne.s32.totalorder %s24, 1
        // Predicated region
        $region49: #{tpu_custom_call.1} parent=31 // pred_check
          %p1383 = pneg %p1382
        $region50: #{tpu_custom_call.1} parent=31 // pred_check_branch
          %1385 = sbr.rel (%p1383) target = $region52
        $region51: #{tpu_custom_call.1} parent=31 // pred_region
          %v1386 = vld [vmem:[#allocation2] sm:$0xff]
          %v1387 = vld [vmem:[#allocation2 + $0x8] sm:$0xff]
          %v1388 = vld [vmem:[#allocation2 + $0x10] sm:$0xff]
          %v1389 = vld [vmem:[#allocation2 + $0x18] sm:$0xff]
          %v1390 = vadd.f32 %v1386, %v1285
          %v1391 = vadd.f32 %v1387, %v1377
          %v1392 = vadd.f32 %v1388, %v1288
          %v1393 = vadd.f32 %v1389, %v1380
          %1394 = vst [vmem:[#allocation2] sm:$0xff] %v1390
          %1395 = vst [vmem:[#allocation2 + $0x8] sm:$0xff] %v1391
          %1396 = vst [vmem:[#allocation2 + $0x10] sm:$0xff] %v1392
          %1397 = vst [vmem:[#allocation2 + $0x18] sm:$0xff] %v1393
        $region52: #{tpu_custom_call.1} parent=31 // pred_fallthru
          _
        %p1398 = scmp.eq.s32.totalorder %s24, 1
        // Predicated region
        $region53: #{tpu_custom_call.1} parent=31 // pred_check
          %p1399 = pneg %p1398
        $region54: #{tpu_custom_call.1} parent=31 // pred_check_branch
          %1401 = sbr.rel (%p1399) target = $region56
        $region55: #{tpu_custom_call.1} parent=31 // pred_region
          %v1402 = vld [vmem:[#allocation2] sm:$0xff]
          %v1403 = vld [vmem:[#allocation2 + $0x8] sm:$0xff]
          %v1404 = vld [vmem:[#allocation2 + $0x10] sm:$0xff]
          %v1405 = vld [vmem:[#allocation2 + $0x18] sm:$0xff]
          %v1406 = vadd.f32 %v1402, %v1285
          %v1407 = vadd.f32 %v1403, %v1377
          %v1408 = vadd.f32 %v1404, %v1288
          %v1409 = vadd.f32 %v1405, %v1380
          %1410 = vst [vmem:[#allocation9] sm:$0xff] %v1406
          %1411 = vst [vmem:[#allocation9 + $0x8] sm:$0xff] %v1407
          %1412 = vst [vmem:[#allocation9 + $0x10] sm:$0xff] %v1408
          %1413 = vst [vmem:[#allocation9 + $0x18] sm:$0xff] %v1409
        $region56: #{tpu_custom_call.1} parent=31 // pred_fallthru
          _
        // Predicated region
        $region57: #{tpu_custom_call.1} parent=31 // pred_check
          %p1414 = pneg %p127
        $region58: #{tpu_custom_call.1} parent=31 // pred_check_branch
          %1416 = sbr.rel (%p1414) target = $region60
        $region59: #{tpu_custom_call.1} parent=31 // pred_region
          %s1417 = smul.u32 2, %s23
          %1419 = vsyncadd [#allocation5], 0
          %s1420 = smul.addr %s1417, 2
          %s1421 = smul.addr %s1420, 8
          %s1422 = scalar_lea.hbm %s3, %s1421
          %s1423 = sshll.u32 [#allocation9], 4
          %s1424 = int_to_ptr.vmem [resolvable:$true] %s1423
          %s1425 = sshll.u32 %s1422, 4
          %s1426 = int_to_ptr.hbm [resolvable:$true] %s1425
          %1431 = dma.vmem_to_hbm [thread:$0]  %s1424, 512, %s1426, [#allocation5], 256, 256, 16
        $region60: #{tpu_custom_call.1} parent=31 // pred_fallthru
          _
        // Predicated region
        $region61: #{tpu_custom_call.1} parent=31 // pred_check
          %p1432 = pneg %p127
        $region62: #{tpu_custom_call.1} parent=31 // pred_check_branch
          %1434 = sbr.rel (%p1432) target = $region64
        $region63: #{tpu_custom_call.1} parent=31 // pred_region
          %1436 = dma.done [#allocation5], 512
        $region64: #{tpu_custom_call.1} parent=31 // pred_fallthru
          _
      $region32: #{tpu_custom_call.1} parent=5 // pred_fallthru
        _
      %p1437 = scmp.le.s32.totalorder 2, %s14
      // Predicated region
      $region65: #{tpu_custom_call.1} parent=5 // pred_check
        %p1438 = pneg %p1437
      $region66: #{tpu_custom_call.1} parent=5 // pred_check_branch
        %1440 = sbr.rel (%p1438) target = $region68
      $region67: #{tpu_custom_call.1} parent=5 // pred_region
        %s1441 = ssub.s32 %s14, 2
      $region68: #{tpu_custom_call.1} parent=5 // pred_fallthru
        _
    $region6: #{tpu_custom_call.1} parent=1 // loop_footer
      %s18 = sadd.s32 1, %s14
    $region7: #{tpu_custom_call.1} parent=1 // loop_footer_branch
      %13 = sbr.rel target = $region3
    $region8: #{tpu_custom_call.1} parent=1 // loop_exit
      _
    %1442 = vsyncpa [#allocation4], 1
    %s1443 = scalar_lea.sflag [#allocation4], 1
    %1444 = vsyncpa %s1443, 1
    %1445 = vsyncpa [#allocation7], 1
    %s1446 = scalar_lea.sflag [#allocation7], 1
    %1447 = vsyncpa %s1446, 1
    %1448 = vsyncpa [#allocation5], 1
    %s1449 = scalar_lea.sflag [#allocation5], 1
    %1450 = vsyncpa %s1449, 1

</llo_original>
